<compile_context>
chip_gen: v7x
topology: tpu7x:2x2x1
jax: 0.10.0
libtpu: 0.0.40
codegen_flags: <defaults>
</compile_context>

<pallas_src>
import functools

import jax
import jax.numpy as jnp
from jax.experimental import pallas as pl
from jax.experimental.pallas import tpu as pltpu

L1_DIM, L2_DIM = 200, 300        # true feature widths (torch module)
L1_PAD, L2_PAD = 256, 384        # lane-aligned (multiple of 128) widths
LN_EPS = 1e-5                    # torch.nn.LayerNorm default
LEAKY_SLOPE = 0.01               # F.leaky_relu default negative_slope


def _leaky_relu(x):
    return jnp.where(x > 0, x, LEAKY_SLOPE * x)


def _layer_norm_padded(x, gamma, beta, n_true):
    """LayerNorm over the first `n_true` lanes of a zero-padded block.

    Padded lanes of x are exactly zero, so sum / sum-of-squares over the full
    (padded) width equal the true-lane statistics; one pass over x, divide by
    the true feature count.  gamma/beta are zero in padded lanes so the
    output stays zero there.
    """
    inv_n = 1.0 / float(n_true)
    s = jnp.sum(x, axis=-1, keepdims=True)
    ss = jnp.sum(x * x, axis=-1, keepdims=True)
    mean = s * inv_n
    var = ss * inv_n - mean * mean
    return (x - mean) * jax.lax.rsqrt(var + LN_EPS) * gamma + beta


def critic_td3_kernel(use_ln,
                      s_ref, a_ref,     # [TB, Ds], [TB, Da]
                      w1_ref,           # [Ds+Da, 2*L1_PAD]   (branch0 | branch1)
                      w2_ref,           # [2, L1_PAD, L2_PAD] (Q1, Q2), zero-padded
                      ln1_ref,          # [6, L1_PAD]: b1,g1,be1,B1,G1,BE1
                      ln2_ref,          # [6, L2_PAD]: b2,g2,be2,B2,G2,BE2
                      w3_ref,           # [2, L2_PAD]: w3_row, W3_row (zero-padded)
                      b3_ref,           # SMEM [1, 2]: [b3, B3]
                      out_ref):         # [TB, 2]
    # ---- fused concat + layer 1 (both branches) in ONE MXU matmul ----
    x = jnp.concatenate([s_ref[...], a_ref[...]], axis=1)        # [TB, Ds+Da]
    h = jnp.dot(x, w1_ref[...], preferred_element_type=jnp.float32)  # [TB, 512]

    # 128-aligned branch split: no cross-lane relayout.
    h1 = h[:, :L1_PAD] + ln1_ref[0:1, :]       # + b1
    H1 = h[:, L1_PAD:] + ln1_ref[3:4, :]       # + B1
    if use_ln:
        h1 = _layer_norm_padded(h1, ln1_ref[1:2, :], ln1_ref[2:3, :], L1_DIM)
        H1 = _layer_norm_padded(H1, ln1_ref[4:5, :], ln1_ref[5:6, :], L1_DIM)
    h1 = _leaky_relu(h1)
    H1 = _leaky_relu(H1)

    # ---- layer 2 (K = 256, N = 384 -> clean MXU tiles) ----
    h2 = jnp.dot(h1, w2_ref[0], preferred_element_type=jnp.float32) + ln2_ref[0:1, :]
    H2 = jnp.dot(H1, w2_ref[1], preferred_element_type=jnp.float32) + ln2_ref[3:4, :]
    if use_ln:
        h2 = _layer_norm_padded(h2, ln2_ref[1:2, :], ln2_ref[2:3, :], L2_DIM)
        H2 = _layer_norm_padded(H2, ln2_ref[4:5, :], ln2_ref[5:6, :], L2_DIM)
    h2 = _leaky_relu(h2)
    H2 = _leaky_relu(H2)

    # ---- layer 3: N = 1 -> VPU multiply + XLU lane reduce (no MXU push) ----
    q1 = jnp.sum(h2 * w3_ref[0:1, :], axis=-1, keepdims=True) + b3_ref[0, 0]
    q2 = jnp.sum(H2 * w3_ref[1:2, :], axis=-1, keepdims=True) + b3_ref[0, 1]

    out_ref[...] = jnp.concatenate([q1, q2], axis=1).astype(out_ref.dtype)


def pack_params(params, state_dim):
    """Repack per-layer params into lane-aligned, zero-padded slabs (done ONCE)."""
    del state_dim  # concat is now done inside the kernel
    in_dim = params["w1"].shape[0]

    # layer 1: [in, 2*L1_PAD], branch 0 at cols 0..255, branch 1 at 256..511.
    w1 = jnp.zeros((in_dim, 2 * L1_PAD), jnp.float32)
    w1 = w1.at[:, :L1_DIM].set(params["w1"])
    w1 = w1.at[:, L1_PAD:L1_PAD + L1_DIM].set(params["W1"])

    # layer 2: [2, L1_PAD, L2_PAD]; padded K-rows / N-cols are zero so padded
    # layer-1 lanes are annihilated and padded layer-2 lanes stay zero.
    w2 = jnp.zeros((2, L1_PAD, L2_PAD), jnp.float32)
    w2 = w2.at[0, :L1_DIM, :L2_DIM].set(params["w2"])
    w2 = w2.at[1, :L1_DIM, :L2_DIM].set(params["W2"])

    # biases + LayerNorm gamma/beta packed into two small slabs.
    ln1 = jnp.zeros((6, L1_PAD), jnp.float32)
    for i, k in enumerate(("b1", "g1", "be1", "B1", "G1", "BE1")):
        ln1 = ln1.at[i, :L1_DIM].set(params[k][0])
    ln2 = jnp.zeros((6, L2_PAD), jnp.float32)
    for i, k in enumerate(("b2", "g2", "be2", "B2", "G2", "BE2")):
        ln2 = ln2.at[i, :L2_DIM].set(params[k][0])

    # layer 3: [2, L2_PAD] rows (zero-padded columns), final biases [1, 2].
    w3 = jnp.zeros((2, L2_PAD), jnp.float32)
    w3 = w3.at[0, :L2_DIM].set(params["w3"][:, 0])
    w3 = w3.at[1, :L2_DIM].set(params["W3"][:, 0])
    b3 = jnp.concatenate([params["b3"], params["B3"]], axis=1)   # [1, 2]

    return {"w1": w1, "w2": w2, "ln1": ln1, "ln2": ln2, "w3": w3, "b3": b3}


def critic_td3_forward(state, action, packed, layer_norm, *, batch_tile=1024):
    B, Ds = state.shape
    Da = action.shape[1]

    if B <= batch_tile:
        TB = B
        Bp = B
    else:
        TB = batch_tile
        num_tiles = -(-B // TB)
        Bp = num_tiles * TB
        if Bp != B:
            # Pad the batch with zero rows so every tile is full (zero rows are
            # numerically safe through LayerNorm: var=0 -> rsqrt(eps) finite).
            state = jnp.pad(state, ((0, Bp - B), (0, 0)))
            action = jnp.pad(action, ((0, Bp - B), (0, 0)))
    grid = (Bp // TB,)

    const2 = lambda i: (0, 0)
    const3 = lambda i: (0, 0, 0)

    kernel = functools.partial(critic_td3_kernel, layer_norm)

    out = pl.pallas_call(
        kernel,
        out_shape=jax.ShapeDtypeStruct((Bp, 2), jnp.float32),
        grid=grid,
        in_specs=[
            pl.BlockSpec((TB, Ds), lambda i: (i, 0)),
            pl.BlockSpec((TB, Da), lambda i: (i, 0)),
            pl.BlockSpec(packed["w1"].shape, const2),
            pl.BlockSpec(packed["w2"].shape, const3),
            pl.BlockSpec(packed["ln1"].shape, const2),
            pl.BlockSpec(packed["ln2"].shape, const2),
            pl.BlockSpec(packed["w3"].shape, const2),
            pl.BlockSpec(memory_space=pltpu.MemorySpace.SMEM),   # b3 scalars
        ],
        out_specs=pl.BlockSpec((TB, 2), lambda i: (i, 0)),
        compiler_params=pltpu.CompilerParams(
            dimension_semantics=("parallel",),
            vmem_limit_bytes=32 * 1024 * 1024),
    )(state, action,
      packed["w1"], packed["w2"], packed["ln1"], packed["ln2"],
      packed["w3"], packed["b3"])

    out = out[:B]
    return out[:, 0:1], out[:, 1:2]


# ---------------------------------------------------------------------------
# Deterministic parameter initialization (mirrors initial_weights_:
# xavier_uniform on Linear weights, zero biases; LayerNorm gamma=1, beta=0).
# ---------------------------------------------------------------------------
def xavier_uniform(key, fan_in, fan_out):
    limit = jnp.sqrt(6.0 / (fan_in + fan_out))
    # stored as [in, out] (transposed vs PyTorch nn.Linear weight)
    return jax.random.uniform(key, (fan_in, fan_out), jnp.float32,
                              minval=-limit, maxval=limit)


def init_params(key, state_dim, action_dim):
    in_dim = state_dim + action_dim
    keys = jax.random.split(key, 6)
    return {
        "w1": xavier_uniform(keys[0], in_dim, L1_DIM),
        "b1": jnp.zeros((1, L1_DIM), jnp.float32),
        "w2": xavier_uniform(keys[1], L1_DIM, L2_DIM),
        "b2": jnp.zeros((1, L2_DIM), jnp.float32),
        "w3": xavier_uniform(keys[2], L2_DIM, 1),
        "b3": jnp.zeros((1, 1), jnp.float32),
        "g1": jnp.ones((1, L1_DIM), jnp.float32),
        "be1": jnp.zeros((1, L1_DIM), jnp.float32),
        "g2": jnp.ones((1, L2_DIM), jnp.float32),
        "be2": jnp.zeros((1, L2_DIM), jnp.float32),
        "W1": xavier_uniform(keys[3], in_dim, L1_DIM),
        "B1": jnp.zeros((1, L1_DIM), jnp.float32),
        "W2": xavier_uniform(keys[4], L1_DIM, L2_DIM),
        "B2": jnp.zeros((1, L2_DIM), jnp.float32),
        "W3": xavier_uniform(keys[5], L2_DIM, 1),
        "B3": jnp.zeros((1, 1), jnp.float32),
        "G1": jnp.ones((1, L1_DIM), jnp.float32),
        "BE1": jnp.zeros((1, L1_DIM), jnp.float32),
        "G2": jnp.ones((1, L2_DIM), jnp.float32),
        "BE2": jnp.zeros((1, L2_DIM), jnp.float32),
    }


# ---------------------------------------------------------------------------
# Pure-JAX reference (independent of the kernel's padded one-pass LayerNorm):
# matches torch semantics — biased variance, eps inside rsqrt.
# ---------------------------------------------------------------------------
def _ref_layer_norm(x, gamma, beta):
    mean = jnp.mean(x, axis=-1, keepdims=True)
    var = jnp.mean(jnp.square(x - mean), axis=-1, keepdims=True)
    return (x - mean) * jax.lax.rsqrt(var + LN_EPS) * gamma + beta


def reference_forward(state, action, p, layer_norm):
    x = jnp.concatenate([state, action], axis=1)

    def branch(w1, b1, w2, b2, w3, b3, g1, be1, g2, be2):
        h = x @ w1 + b1
        if layer_norm:
            h = _ref_layer_norm(h, g1, be1)
        h = _leaky_relu(h)
        h = h @ w2 + b2
        if layer_norm:
            h = _ref_layer_norm(h, g2, be2)
        h = _leaky_relu(h)
        return h @ w3 + b3

    o1 = branch(p["w1"], p["b1"], p["w2"], p["b2"], p["w3"], p["b3"],
                p["g1"], p["be1"], p["g2"], p["be2"])
    o2 = branch(p["W1"], p["B1"], p["W2"], p["B2"], p["W3"], p["B3"],
                p["G1"], p["BE1"], p["G2"], p["BE2"])
    return o1, o2


if __name__ == "__main__":
    B, state_dim, action_dim = 8, 16, 8

    key = jax.random.PRNGKey(0)
    k_state, k_action, k_params = jax.random.split(key, 3)
    state = jax.random.normal(k_state, (B, state_dim), jnp.float32)
    action = jax.random.normal(k_action, (B, action_dim), jnp.float32)
    params = init_params(k_params, state_dim, action_dim)
    packed = pack_params(params, state_dim)

    for layer_norm in (True, False):
        out1, out2 = critic_td3_forward(state, action, packed, layer_norm)
        out1 = jax.block_until_ready(out1)
        out2 = jax.block_until_ready(out2)

        ref1, ref2 = reference_forward(state, action, params, layer_norm)
        assert out1.shape == (B, 1) and out2.shape == (B, 1)
        assert jnp.allclose(out1, ref1, atol=1e-4, rtol=1e-4)
        assert jnp.allclose(out2, ref2, atol=1e-4, rtol=1e-4)

    print("KERNEL_OK")
</pallas_src>

<mosaic_0001>
module attributes {stable_mosaic.version = 11 : i64} {
  func.func @critic_td3_kernel(%arg0: i32, %arg1: memref<8x16xf32, #tpu.memory_space<vmem>>, %arg2: memref<8x8xf32, #tpu.memory_space<vmem>>, %arg3: memref<24x512xf32, #tpu.memory_space<vmem>>, %arg4: memref<2x256x384xf32, #tpu.memory_space<vmem>>, %arg5: memref<6x256xf32, #tpu.memory_space<vmem>>, %arg6: memref<6x384xf32, #tpu.memory_space<vmem>>, %arg7: memref<2x384xf32, #tpu.memory_space<vmem>>, %arg8: memref<1x2xf32, #tpu.memory_space<smem>>, %arg9: memref<8x2xf32, #tpu.memory_space<vmem>>) attributes {dimension_semantics = [#tpu.dimension_semantics<parallel>], iteration_bounds = array<i64: 1>, scalar_prefetch = 0 : i64, scratch_operands = 0 : i64, tpu.core_type = #tpu.core_type<tc>, window_params = [{transform_indices = @transform_0, window_bounds = array<i64: 8, 16>}, {transform_indices = @transform_1, window_bounds = array<i64: 8, 8>}, {pipeline_mode = #tpu.pipeline_mode<synchronous>, transform_indices = @transform_2, window_bounds = array<i64: 24, 512>}, {pipeline_mode = #tpu.pipeline_mode<synchronous>, transform_indices = @transform_3, window_bounds = array<i64: 2, 256, 384>}, {pipeline_mode = #tpu.pipeline_mode<synchronous>, transform_indices = @transform_4, window_bounds = array<i64: 6, 256>}, {pipeline_mode = #tpu.pipeline_mode<synchronous>, transform_indices = @transform_5, window_bounds = array<i64: 6, 384>}, {pipeline_mode = #tpu.pipeline_mode<synchronous>, transform_indices = @transform_6, window_bounds = array<i64: 2, 384>}, {transform_indices = @transform_7, window_bounds = array<i64: 1, 2>}, {transform_indices = @transform_8, window_bounds = array<i64: 8, 2>}]} {
    %c0 = arith.constant 0 : index
    %c0_0 = arith.constant 0 : index
    %0 = vector.load %arg1[%c0, %c0_0] : memref<8x16xf32, #tpu.memory_space<vmem>>, vector<8x16xf32>
    %c0_1 = arith.constant 0 : index
    %c0_2 = arith.constant 0 : index
    %1 = vector.load %arg2[%c0_1, %c0_2] : memref<8x8xf32, #tpu.memory_space<vmem>>, vector<8x8xf32>
    %2 = tpu.concatenate %0, %1 in 1 : vector<8x16xf32>, vector<8x8xf32> -> vector<8x24xf32>
    %c0_3 = arith.constant 0 : index
    %c0_4 = arith.constant 0 : index
    %3 = vector.load %arg3[%c0_3, %c0_4] : memref<24x512xf32, #tpu.memory_space<vmem>>, vector<24x512xf32>
    %cst = arith.constant dense<0.000000e+00> : vector<8x512xf32>
    %4 = tpu.matmul %2, %3, %cst {dimension_numbers = #tpu.dot_dimension_numbers<[1], [0], [0], [1], [0, 0, 1, 1], [], []>} : vector<8x24xf32>, vector<24x512xf32>, vector<8x512xf32> -> vector<8x512xf32>
    %5 = vector.extract_strided_slice %4 {offsets = [0, 0], sizes = [8, 256], strides = [1, 1]} : vector<8x512xf32> to vector<8x256xf32>
    %c0_5 = arith.constant 0 : index
    %c0_6 = arith.constant 0 : index
    %6 = vector.load %arg5[%c0_5, %c0_6] : memref<6x256xf32, #tpu.memory_space<vmem>>, vector<1x256xf32>
    %7 = vector.broadcast %6 : vector<1x256xf32> to vector<8x256xf32>
    %8 = arith.addf %5, %7 : vector<8x256xf32>
    %9 = vector.extract_strided_slice %4 {offsets = [0, 256], sizes = [8, 256], strides = [1, 1]} : vector<8x512xf32> to vector<8x256xf32>
    %c3 = arith.constant 3 : index
    %c0_7 = arith.constant 0 : index
    %10 = vector.load %arg5[%c3, %c0_7] : memref<6x256xf32, #tpu.memory_space<vmem>>, vector<1x256xf32>
    %11 = vector.broadcast %10 : vector<1x256xf32> to vector<8x256xf32>
    %12 = arith.addf %9, %11 : vector<8x256xf32>
    %c1 = arith.constant 1 : index
    %c0_8 = arith.constant 0 : index
    %13 = vector.load %arg5[%c1, %c0_8] : memref<6x256xf32, #tpu.memory_space<vmem>>, vector<1x256xf32>
    %c2 = arith.constant 2 : index
    %c0_9 = arith.constant 0 : index
    %14 = vector.load %arg5[%c2, %c0_9] : memref<6x256xf32, #tpu.memory_space<vmem>>, vector<1x256xf32>
    %cst_10 = arith.constant dense<0.000000e+00> : vector<8xf32>
    %15 = vector.multi_reduction <add>, %8, %cst_10 [1] : vector<8x256xf32> to vector<8xf32>
    %16 = vector.shape_cast %15 : vector<8xf32> to vector<8x1xf32>
    %17 = arith.mulf %8, %8 : vector<8x256xf32>
    %cst_11 = arith.constant dense<0.000000e+00> : vector<8xf32>
    %18 = vector.multi_reduction <add>, %17, %cst_11 [1] : vector<8x256xf32> to vector<8xf32>
    %19 = vector.shape_cast %18 : vector<8xf32> to vector<8x1xf32>
    %cst_12 = arith.constant 5.000000e-03 : f32
    %20 = vector.broadcast %cst_12 : f32 to vector<8x1xf32>
    %21 = arith.mulf %16, %20 : vector<8x1xf32>
    %cst_13 = arith.constant 5.000000e-03 : f32
    %22 = vector.broadcast %cst_13 : f32 to vector<8x1xf32>
    %23 = arith.mulf %19, %22 : vector<8x1xf32>
    %24 = arith.mulf %21, %21 : vector<8x1xf32>
    %25 = arith.subf %23, %24 : vector<8x1xf32>
    %26 = vector.broadcast %21 : vector<8x1xf32> to vector<8x256xf32>
    %27 = arith.subf %8, %26 : vector<8x256xf32>
    %cst_14 = arith.constant 9.99999974E-6 : f32
    %28 = vector.broadcast %cst_14 : f32 to vector<8x1xf32>
    %29 = arith.addf %25, %28 : vector<8x1xf32>
    %30 = math.rsqrt %29 : vector<8x1xf32>
    %31 = vector.broadcast %30 : vector<8x1xf32> to vector<8x256xf32>
    %32 = arith.mulf %27, %31 : vector<8x256xf32>
    %33 = vector.broadcast %13 : vector<1x256xf32> to vector<8x256xf32>
    %34 = arith.mulf %32, %33 : vector<8x256xf32>
    %35 = vector.broadcast %14 : vector<1x256xf32> to vector<8x256xf32>
    %36 = arith.addf %34, %35 : vector<8x256xf32>
    %c4 = arith.constant 4 : index
    %c0_15 = arith.constant 0 : index
    %37 = vector.load %arg5[%c4, %c0_15] : memref<6x256xf32, #tpu.memory_space<vmem>>, vector<1x256xf32>
    %c5 = arith.constant 5 : index
    %c0_16 = arith.constant 0 : index
    %38 = vector.load %arg5[%c5, %c0_16] : memref<6x256xf32, #tpu.memory_space<vmem>>, vector<1x256xf32>
    %cst_17 = arith.constant dense<0.000000e+00> : vector<8xf32>
    %39 = vector.multi_reduction <add>, %12, %cst_17 [1] : vector<8x256xf32> to vector<8xf32>
    %40 = vector.shape_cast %39 : vector<8xf32> to vector<8x1xf32>
    %41 = arith.mulf %12, %12 : vector<8x256xf32>
    %cst_18 = arith.constant dense<0.000000e+00> : vector<8xf32>
    %42 = vector.multi_reduction <add>, %41, %cst_18 [1] : vector<8x256xf32> to vector<8xf32>
    %43 = vector.shape_cast %42 : vector<8xf32> to vector<8x1xf32>
    %cst_19 = arith.constant 5.000000e-03 : f32
    %44 = vector.broadcast %cst_19 : f32 to vector<8x1xf32>
    %45 = arith.mulf %40, %44 : vector<8x1xf32>
    %cst_20 = arith.constant 5.000000e-03 : f32
    %46 = vector.broadcast %cst_20 : f32 to vector<8x1xf32>
    %47 = arith.mulf %43, %46 : vector<8x1xf32>
    %48 = arith.mulf %45, %45 : vector<8x1xf32>
    %49 = arith.subf %47, %48 : vector<8x1xf32>
    %50 = vector.broadcast %45 : vector<8x1xf32> to vector<8x256xf32>
    %51 = arith.subf %12, %50 : vector<8x256xf32>
    %cst_21 = arith.constant 9.99999974E-6 : f32
    %52 = vector.broadcast %cst_21 : f32 to vector<8x1xf32>
    %53 = arith.addf %49, %52 : vector<8x1xf32>
    %54 = math.rsqrt %53 : vector<8x1xf32>
    %55 = vector.broadcast %54 : vector<8x1xf32> to vector<8x256xf32>
    %56 = arith.mulf %51, %55 : vector<8x256xf32>
    %57 = vector.broadcast %37 : vector<1x256xf32> to vector<8x256xf32>
    %58 = arith.mulf %56, %57 : vector<8x256xf32>
    %59 = vector.broadcast %38 : vector<1x256xf32> to vector<8x256xf32>
    %60 = arith.addf %58, %59 : vector<8x256xf32>
    %cst_22 = arith.constant 0.000000e+00 : f32
    %61 = vector.broadcast %cst_22 : f32 to vector<8x256xf32>
    %62 = arith.cmpf ogt, %36, %61 : vector<8x256xf32>
    %cst_23 = arith.constant 0.00999999977 : f32
    %63 = vector.broadcast %cst_23 : f32 to vector<8x256xf32>
    %64 = arith.mulf %63, %36 : vector<8x256xf32>
    %65 = arith.select %62, %36, %64 : vector<8x256xi1>, vector<8x256xf32>
    %cst_24 = arith.constant 0.000000e+00 : f32
    %66 = vector.broadcast %cst_24 : f32 to vector<8x256xf32>
    %67 = arith.cmpf ogt, %60, %66 : vector<8x256xf32>
    %cst_25 = arith.constant 0.00999999977 : f32
    %68 = vector.broadcast %cst_25 : f32 to vector<8x256xf32>
    %69 = arith.mulf %68, %60 : vector<8x256xf32>
    %70 = arith.select %67, %60, %69 : vector<8x256xi1>, vector<8x256xf32>
    %c0_26 = arith.constant 0 : index
    %c0_27 = arith.constant 0 : index
    %c0_28 = arith.constant 0 : index
    %71 = vector.load %arg4[%c0_26, %c0_27, %c0_28] : memref<2x256x384xf32, #tpu.memory_space<vmem>>, vector<1x256x384xf32>
    %72 = vector.shape_cast %71 : vector<1x256x384xf32> to vector<256x384xf32>
    %cst_29 = arith.constant dense<0.000000e+00> : vector<8x384xf32>
    %73 = tpu.matmul %65, %72, %cst_29 {dimension_numbers = #tpu.dot_dimension_numbers<[1], [0], [0], [1], [0, 0, 1, 1], [], []>} : vector<8x256xf32>, vector<256x384xf32>, vector<8x384xf32> -> vector<8x384xf32>
    %c0_30 = arith.constant 0 : index
    %c0_31 = arith.constant 0 : index
    %74 = vector.load %arg6[%c0_30, %c0_31] : memref<6x384xf32, #tpu.memory_space<vmem>>, vector<1x384xf32>
    %75 = vector.broadcast %74 : vector<1x384xf32> to vector<8x384xf32>
    %76 = arith.addf %73, %75 : vector<8x384xf32>
    %c1_32 = arith.constant 1 : index
    %c0_33 = arith.constant 0 : index
    %c0_34 = arith.constant 0 : index
    %77 = vector.load %arg4[%c1_32, %c0_33, %c0_34] : memref<2x256x384xf32, #tpu.memory_space<vmem>>, vector<1x256x384xf32>
    %78 = vector.shape_cast %77 : vector<1x256x384xf32> to vector<256x384xf32>
    %cst_35 = arith.constant dense<0.000000e+00> : vector<8x384xf32>
    %79 = tpu.matmul %70, %78, %cst_35 {dimension_numbers = #tpu.dot_dimension_numbers<[1], [0], [0], [1], [0, 0, 1, 1], [], []>} : vector<8x256xf32>, vector<256x384xf32>, vector<8x384xf32> -> vector<8x384xf32>
    %c3_36 = arith.constant 3 : index
    %c0_37 = arith.constant 0 : index
    %80 = vector.load %arg6[%c3_36, %c0_37] : memref<6x384xf32, #tpu.memory_space<vmem>>, vector<1x384xf32>
    %81 = vector.broadcast %80 : vector<1x384xf32> to vector<8x384xf32>
    %82 = arith.addf %79, %81 : vector<8x384xf32>
    %c1_38 = arith.constant 1 : index
    %c0_39 = arith.constant 0 : index
    %83 = vector.load %arg6[%c1_38, %c0_39] : memref<6x384xf32, #tpu.memory_space<vmem>>, vector<1x384xf32>
    %c2_40 = arith.constant 2 : index
    %c0_41 = arith.constant 0 : index
    %84 = vector.load %arg6[%c2_40, %c0_41] : memref<6x384xf32, #tpu.memory_space<vmem>>, vector<1x384xf32>
    %cst_42 = arith.constant dense<0.000000e+00> : vector<8xf32>
    %85 = vector.multi_reduction <add>, %76, %cst_42 [1] : vector<8x384xf32> to vector<8xf32>
    %86 = vector.shape_cast %85 : vector<8xf32> to vector<8x1xf32>
    %87 = arith.mulf %76, %76 : vector<8x384xf32>
    %cst_43 = arith.constant dense<0.000000e+00> : vector<8xf32>
    %88 = vector.multi_reduction <add>, %87, %cst_43 [1] : vector<8x384xf32> to vector<8xf32>
    %89 = vector.shape_cast %88 : vector<8xf32> to vector<8x1xf32>
    %cst_44 = arith.constant 0.00333333341 : f32
    %90 = vector.broadcast %cst_44 : f32 to vector<8x1xf32>
    %91 = arith.mulf %86, %90 : vector<8x1xf32>
    %cst_45 = arith.constant 0.00333333341 : f32
    %92 = vector.broadcast %cst_45 : f32 to vector<8x1xf32>
    %93 = arith.mulf %89, %92 : vector<8x1xf32>
    %94 = arith.mulf %91, %91 : vector<8x1xf32>
    %95 = arith.subf %93, %94 : vector<8x1xf32>
    %96 = vector.broadcast %91 : vector<8x1xf32> to vector<8x384xf32>
    %97 = arith.subf %76, %96 : vector<8x384xf32>
    %cst_46 = arith.constant 9.99999974E-6 : f32
    %98 = vector.broadcast %cst_46 : f32 to vector<8x1xf32>
    %99 = arith.addf %95, %98 : vector<8x1xf32>
    %100 = math.rsqrt %99 : vector<8x1xf32>
    %101 = vector.broadcast %100 : vector<8x1xf32> to vector<8x384xf32>
    %102 = arith.mulf %97, %101 : vector<8x384xf32>
    %103 = vector.broadcast %83 : vector<1x384xf32> to vector<8x384xf32>
    %104 = arith.mulf %102, %103 : vector<8x384xf32>
    %105 = vector.broadcast %84 : vector<1x384xf32> to vector<8x384xf32>
    %106 = arith.addf %104, %105 : vector<8x384xf32>
    %c4_47 = arith.constant 4 : index
    %c0_48 = arith.constant 0 : index
    %107 = vector.load %arg6[%c4_47, %c0_48] : memref<6x384xf32, #tpu.memory_space<vmem>>, vector<1x384xf32>
    %c5_49 = arith.constant 5 : index
    %c0_50 = arith.constant 0 : index
    %108 = vector.load %arg6[%c5_49, %c0_50] : memref<6x384xf32, #tpu.memory_space<vmem>>, vector<1x384xf32>
    %cst_51 = arith.constant dense<0.000000e+00> : vector<8xf32>
    %109 = vector.multi_reduction <add>, %82, %cst_51 [1] : vector<8x384xf32> to vector<8xf32>
    %110 = vector.shape_cast %109 : vector<8xf32> to vector<8x1xf32>
    %111 = arith.mulf %82, %82 : vector<8x384xf32>
    %cst_52 = arith.constant dense<0.000000e+00> : vector<8xf32>
    %112 = vector.multi_reduction <add>, %111, %cst_52 [1] : vector<8x384xf32> to vector<8xf32>
    %113 = vector.shape_cast %112 : vector<8xf32> to vector<8x1xf32>
    %cst_53 = arith.constant 0.00333333341 : f32
    %114 = vector.broadcast %cst_53 : f32 to vector<8x1xf32>
    %115 = arith.mulf %110, %114 : vector<8x1xf32>
    %cst_54 = arith.constant 0.00333333341 : f32
    %116 = vector.broadcast %cst_54 : f32 to vector<8x1xf32>
    %117 = arith.mulf %113, %116 : vector<8x1xf32>
    %118 = arith.mulf %115, %115 : vector<8x1xf32>
    %119 = arith.subf %117, %118 : vector<8x1xf32>
    %120 = vector.broadcast %115 : vector<8x1xf32> to vector<8x384xf32>
    %121 = arith.subf %82, %120 : vector<8x384xf32>
    %cst_55 = arith.constant 9.99999974E-6 : f32
    %122 = vector.broadcast %cst_55 : f32 to vector<8x1xf32>
    %123 = arith.addf %119, %122 : vector<8x1xf32>
    %124 = math.rsqrt %123 : vector<8x1xf32>
    %125 = vector.broadcast %124 : vector<8x1xf32> to vector<8x384xf32>
    %126 = arith.mulf %121, %125 : vector<8x384xf32>
    %127 = vector.broadcast %107 : vector<1x384xf32> to vector<8x384xf32>
    %128 = arith.mulf %126, %127 : vector<8x384xf32>
    %129 = vector.broadcast %108 : vector<1x384xf32> to vector<8x384xf32>
    %130 = arith.addf %128, %129 : vector<8x384xf32>
    %cst_56 = arith.constant 0.000000e+00 : f32
    %131 = vector.broadcast %cst_56 : f32 to vector<8x384xf32>
    %132 = arith.cmpf ogt, %106, %131 : vector<8x384xf32>
    %cst_57 = arith.constant 0.00999999977 : f32
    %133 = vector.broadcast %cst_57 : f32 to vector<8x384xf32>
    %134 = arith.mulf %133, %106 : vector<8x384xf32>
    %135 = arith.select %132, %106, %134 : vector<8x384xi1>, vector<8x384xf32>
    %cst_58 = arith.constant 0.000000e+00 : f32
    %136 = vector.broadcast %cst_58 : f32 to vector<8x384xf32>
    %137 = arith.cmpf ogt, %130, %136 : vector<8x384xf32>
    %cst_59 = arith.constant 0.00999999977 : f32
    %138 = vector.broadcast %cst_59 : f32 to vector<8x384xf32>
    %139 = arith.mulf %138, %130 : vector<8x384xf32>
    %140 = arith.select %137, %130, %139 : vector<8x384xi1>, vector<8x384xf32>
    %c0_60 = arith.constant 0 : index
    %c0_61 = arith.constant 0 : index
    %141 = vector.load %arg7[%c0_60, %c0_61] : memref<2x384xf32, #tpu.memory_space<vmem>>, vector<1x384xf32>
    %142 = vector.broadcast %141 : vector<1x384xf32> to vector<8x384xf32>
    %143 = arith.mulf %135, %142 : vector<8x384xf32>
    %cst_62 = arith.constant dense<0.000000e+00> : vector<8xf32>
    %144 = vector.multi_reduction <add>, %143, %cst_62 [1] : vector<8x384xf32> to vector<8xf32>
    %145 = vector.shape_cast %144 : vector<8xf32> to vector<8x1xf32>
    %c0_63 = arith.constant 0 : index
    %c0_64 = arith.constant 0 : index
    %146 = memref.load %arg8[%c0_63, %c0_64] : memref<1x2xf32, #tpu.memory_space<smem>>
    %147 = vector.broadcast %146 : f32 to vector<8x1xf32>
    %148 = arith.addf %145, %147 : vector<8x1xf32>
    %c1_65 = arith.constant 1 : index
    %c0_66 = arith.constant 0 : index
    %149 = vector.load %arg7[%c1_65, %c0_66] : memref<2x384xf32, #tpu.memory_space<vmem>>, vector<1x384xf32>
    %150 = vector.broadcast %149 : vector<1x384xf32> to vector<8x384xf32>
    %151 = arith.mulf %140, %150 : vector<8x384xf32>
    %cst_67 = arith.constant dense<0.000000e+00> : vector<8xf32>
    %152 = vector.multi_reduction <add>, %151, %cst_67 [1] : vector<8x384xf32> to vector<8xf32>
    %153 = vector.shape_cast %152 : vector<8xf32> to vector<8x1xf32>
    %c0_68 = arith.constant 0 : index
    %c1_69 = arith.constant 1 : index
    %154 = memref.load %arg8[%c0_68, %c1_69] : memref<1x2xf32, #tpu.memory_space<smem>>
    %155 = vector.broadcast %154 : f32 to vector<8x1xf32>
    %156 = arith.addf %153, %155 : vector<8x1xf32>
    %157 = tpu.concatenate %148, %156 in 1 : vector<8x1xf32>, vector<8x1xf32> -> vector<8x2xf32>
    %c0_70 = arith.constant 0 : index
    %c0_71 = arith.constant 0 : index
    %158 = vector.load %arg9[%c0_70, %c0_71] : memref<8x2xf32, #tpu.memory_space<vmem>>, vector<8x2xf32>
    tpu.vector_store %arg9[%c0_70, %c0_71], %157 {strides = array<i32>} : memref<8x2xf32, #tpu.memory_space<vmem>>, vector<8x2xf32>,
    return
  }
  func.func @transform_0(%arg0: i32) -> (i32, i32) {
    %c0_i32 = arith.constant 0 : i32
    %c0_i32_0 = arith.constant 0 : i32
    return %arg0, %c0_i32 : i32, i32
  }
  func.func @transform_1(%arg0: i32) -> (i32, i32) {
    %c0_i32 = arith.constant 0 : i32
    %c0_i32_0 = arith.constant 0 : i32
    return %arg0, %c0_i32 : i32, i32
  }
  func.func @transform_2(%arg0: i32) -> (i32, i32) {
    %c0_i32 = arith.constant 0 : i32
    %c0_i32_0 = arith.constant 0 : i32
    %c0_i32_1 = arith.constant 0 : i32
    return %c0_i32, %c0_i32_0 : i32, i32
  }
  func.func @transform_3(%arg0: i32) -> (i32, i32, i32) {
    %c0_i32 = arith.constant 0 : i32
    %c0_i32_0 = arith.constant 0 : i32
    %c0_i32_1 = arith.constant 0 : i32
    %c0_i32_2 = arith.constant 0 : i32
    return %c0_i32, %c0_i32_0, %c0_i32_1 : i32, i32, i32
  }
  func.func @transform_4(%arg0: i32) -> (i32, i32) {
    %c0_i32 = arith.constant 0 : i32
    %c0_i32_0 = arith.constant 0 : i32
    %c0_i32_1 = arith.constant 0 : i32
    return %c0_i32, %c0_i32_0 : i32, i32
  }
  func.func @transform_5(%arg0: i32) -> (i32, i32) {
    %c0_i32 = arith.constant 0 : i32
    %c0_i32_0 = arith.constant 0 : i32
    %c0_i32_1 = arith.constant 0 : i32
    return %c0_i32, %c0_i32_0 : i32, i32
  }
  func.func @transform_6(%arg0: i32) -> (i32, i32) {
    %c0_i32 = arith.constant 0 : i32
    %c0_i32_0 = arith.constant 0 : i32
    %c0_i32_1 = arith.constant 0 : i32
    return %c0_i32, %c0_i32_0 : i32, i32
  }
  func.func @transform_7(%arg0: i32) -> (i32, i32) {
    %c0_i32 = arith.constant 0 : i32
    %c0_i32_0 = arith.constant 0 : i32
    %c0_i32_1 = arith.constant 0 : i32
    return %c0_i32, %c0_i32_0 : i32, i32
  }
  func.func @transform_8(%arg0: i32) -> (i32, i32) {
    %c0_i32 = arith.constant 0 : i32
    %c0_i32_0 = arith.constant 0 : i32
    return %arg0, %c0_i32 : i32, i32
  }
}

</mosaic_0001>

<llo_original>
// kernel: tpu_custom_call.1
$region0: #{tpu_custom_call.1}
  #allocation0 [shape = 'u32[]', space=smem, size = 0x4, offset = 0x4, fixed_abs, tag = 'smem constant byte address 0x4 - core index']
  #allocation1 [shape = 'u32[144,128]{1,0:T(1,128)}', space=vmem, size = 0x12000, scoped, tag = 'internal scratch']
  %s0 = inlined_call_operand.hbm [shape: f32[8,16], index: 0, kind: input, shape index: {}]
  %s1 = inlined_call_operand.hbm [shape: f32[8,8], index: 1, kind: input, shape index: {}]
  %s2 = inlined_call_operand.hbm [shape: f32[24,512], index: 2, kind: input, shape index: {}]
  %s3 = inlined_call_operand.hbm [shape: f32[2,256,384], index: 3, kind: input, shape index: {}]
  %s4 = inlined_call_operand.hbm [shape: f32[6,256], index: 4, kind: input, shape index: {}]
  %s5 = inlined_call_operand.hbm [shape: f32[6,384], index: 5, kind: input, shape index: {}]
  %s6 = inlined_call_operand.vmem [shape: f32[2,384], index: 6, kind: input, shape index: {}]
  %s7 = inlined_call_operand.vmem [shape: f32[1,2], index: 7, kind: input, shape index: {}]
  %s8 = inlined_call_operand.vmem [shape: f32[8,2], index: 8, kind: output, shape index: {}]
  %s9 = sld [smem:[#allocation0]]
  $region70: #{tpu_custom_call.1} parent=0
    _
  %s11 = ssub.s32 1, %s9
  %s12 = scalar_select 0, %s11, %s9
  $region1: #{tpu_custom_call.1} parent=0
    #allocation2 [shape = 'u8[4096]{0}', space=vmem, size = 0x1000, scoped, tag = 'input window, operand 0, single buffered']
    #allocation3 [shape = 's32[1]{0}', space=sflag, size = 0x4, scoped, tag = 'scoped memory for tpu_custom_call.1']
    #allocation4 [shape = 's32[1]{0}', space=sflag, size = 0x4, scoped, tag = 'scoped memory for tpu_custom_call.1']
    #allocation5 [shape = 'u8[4096]{0}', space=vmem, size = 0x1000, scoped, tag = 'input window, operand 1, single buffered']
    #allocation6 [shape = 's32[1]{0}', space=sflag, size = 0x4, scoped, tag = 'scoped memory for tpu_custom_call.1']
    #allocation7 [shape = 'u8[49152]{0}', space=vmem, size = 0xc000, scoped, tag = 'input window, operand 2, single buffered']
    #allocation8 [shape = 'u8[786432]{0}', space=vmem, size = 0xc0000, scoped, tag = 'input window, operand 3, single buffered']
    #allocation9 [shape = 's32[1]{0}', space=sflag, size = 0x4, scoped, tag = 'scoped memory for tpu_custom_call.1']
    #allocation10 [shape = 'u8[8192]{0}', space=vmem, size = 0x2000, scoped, tag = 'input window, operand 4, single buffered']
    #allocation11 [shape = 'u8[12288]{0}', space=vmem, size = 0x3000, scoped, tag = 'input window, operand 5, single buffered']
    #allocation12 [shape = 's32[1]{0}', space=sflag, size = 0x4, scoped, tag = 'scoped memory for tpu_custom_call.1']
    #allocation13 [shape = 'u8[512]{0}', space=smem, size = 0x200, scoped, tag = 'input window, operand 7, single buffered']
    %13 = vsyncpa [#allocation3], 0
    %14 = vsyncpa [#allocation6], 0
    %15 = vsyncpa [#allocation9], 0
    %16 = vsyncpa [#allocation12], 0
    %17 = vsyncpa [#allocation4], 0
    // Predicated region
    $region2: #{tpu_custom_call.1} parent=1 // pred_check
      _
    $region3: #{tpu_custom_call.1} parent=1 // pred_check_branch
      %19 = sbr.rel (0) target = $region5
    $region4: #{tpu_custom_call.1} parent=1 // pred_region
      %s21 = ssub.s32 128, 128
      %22 = vsyncadd [#allocation3], %s21
      %s24 = sshll.u32 [#allocation2], 4
      %s25 = int_to_ptr.vmem [resolvable:$true] %s24
      %27 = dma.hbm_to_vmem [thread:$0]  %s0, 128, %s25, [#allocation3]
    $region5: #{tpu_custom_call.1} parent=1 // pred_fallthru
      _
    // Predicated region
    $region6: #{tpu_custom_call.1} parent=1 // pred_check
      _
    $region7: #{tpu_custom_call.1} parent=1 // pred_check_branch
      %29 = sbr.rel (0) target = $region9
    $region8: #{tpu_custom_call.1} parent=1 // pred_region
      %s31 = ssub.s32 128, 128
      %32 = vsyncadd [#allocation6], %s31
      %s34 = sshll.u32 [#allocation5], 4
      %s35 = int_to_ptr.vmem [resolvable:$true] %s34
      %37 = dma.hbm_to_vmem [thread:$0]  %s1, 128, %s35, [#allocation6]
    $region9: #{tpu_custom_call.1} parent=1 // pred_fallthru
      _
    // Predicated region
    $region10: #{tpu_custom_call.1} parent=1 // pred_check
      _
    $region11: #{tpu_custom_call.1} parent=1 // pred_check_branch
      %39 = sbr.rel (0) target = $region13
    $region12: #{tpu_custom_call.1} parent=1 // pred_region
      %s41 = ssub.s32 1536, 1536
      %42 = vsyncadd [#allocation6], %s41
      %s43 = sshll.u32 [#allocation7], 4
      %s44 = int_to_ptr.vmem [resolvable:$true] %s43
      %49 = dma.hbm_to_vmem [thread:$0]  %s2, 1536, %s44, [#allocation6], 512, 512, 32
    $region13: #{tpu_custom_call.1} parent=1 // pred_fallthru
      _
    // Predicated region
    $region14: #{tpu_custom_call.1} parent=1 // pred_check
      _
    $region15: #{tpu_custom_call.1} parent=1 // pred_check_branch
      %51 = sbr.rel (0) target = $region17
    $region16: #{tpu_custom_call.1} parent=1 // pred_region
      %s53 = ssub.s32 24576, 24576
      %54 = vsyncadd [#allocation9], %s53
      %s55 = sshll.u32 [#allocation8], 4
      %s56 = int_to_ptr.vmem [resolvable:$true] %s55
      %61 = dma.hbm_to_vmem [thread:$0]  %s3, 24576, %s56, [#allocation9], 384, 384, 24
    $region17: #{tpu_custom_call.1} parent=1 // pred_fallthru
      _
    // Predicated region
    $region18: #{tpu_custom_call.1} parent=1 // pred_check
      _
    $region19: #{tpu_custom_call.1} parent=1 // pred_check_branch
      %63 = sbr.rel (0) target = $region21
    $region20: #{tpu_custom_call.1} parent=1 // pred_region
      %s65 = ssub.s32 256, 256
      %66 = vsyncadd [#allocation9], %s65
      %s68 = sshll.u32 [#allocation10], 4
      %s69 = int_to_ptr.vmem [resolvable:$true] %s68
      %71 = dma.hbm_to_vmem [thread:$0]  %s4, 256, %s69, [#allocation9]
    $region21: #{tpu_custom_call.1} parent=1 // pred_fallthru
      _
    // Predicated region
    $region22: #{tpu_custom_call.1} parent=1 // pred_check
      _
    $region23: #{tpu_custom_call.1} parent=1 // pred_check_branch
      %73 = sbr.rel (0) target = $region25
    $region24: #{tpu_custom_call.1} parent=1 // pred_region
      %s75 = ssub.s32 384, 384
      %76 = vsyncadd [#allocation12], %s75
      %s78 = sshll.u32 [#allocation11], 4
      %s79 = int_to_ptr.vmem [resolvable:$true] %s78
      %81 = dma.hbm_to_vmem [thread:$0]  %s5, 384, %s79, [#allocation12]
    $region25: #{tpu_custom_call.1} parent=1 // pred_fallthru
      _
    // Predicated region
    $region26: #{tpu_custom_call.1} parent=1 // pred_check
      _
    $region27: #{tpu_custom_call.1} parent=1 // pred_check_branch
      %83 = sbr.rel (0) target = $region29
    $region28: #{tpu_custom_call.1} parent=1 // pred_region
      _
    $region29: #{tpu_custom_call.1} parent=1 // pred_fallthru
      _
    // Predicated region
    $region30: #{tpu_custom_call.1} parent=1 // pred_check
      _
    $region31: #{tpu_custom_call.1} parent=1 // pred_check_branch
      %85 = sbr.rel (0) target = $region33
    $region32: #{tpu_custom_call.1} parent=1 // pred_region
      %s87 = ssub.s32 16, 16
      %88 = vsyncadd [#allocation4], %s87
      %s90 = sshll.u32 %s7, 4
      %s91 = int_to_ptr.vmem [resolvable:$true] %s90
      %93 = dma.vmem_to_smem %s91, 16, [#allocation13], [#allocation4]
    $region33: #{tpu_custom_call.1} parent=1 // pred_fallthru
      _
    // Predicated region
    $region34: #{tpu_custom_call.1} parent=1 // pred_check
      _
    $region35: #{tpu_custom_call.1} parent=1 // pred_check_branch
      %95 = sbr.rel (0) target = $region37
    $region36: #{tpu_custom_call.1} parent=1 // pred_region
      %96 = dma.done [#allocation3], 128
    $region37: #{tpu_custom_call.1} parent=1 // pred_fallthru
      _
    // Predicated region
    $region38: #{tpu_custom_call.1} parent=1 // pred_check
      _
    $region39: #{tpu_custom_call.1} parent=1 // pred_check_branch
      %98 = sbr.rel (0) target = $region41
    $region40: #{tpu_custom_call.1} parent=1 // pred_region
      %99 = dma.done [#allocation6], 128
    $region41: #{tpu_custom_call.1} parent=1 // pred_fallthru
      _
    // Predicated region
    $region42: #{tpu_custom_call.1} parent=1 // pred_check
      _
    $region43: #{tpu_custom_call.1} parent=1 // pred_check_branch
      %101 = sbr.rel (0) target = $region45
    $region44: #{tpu_custom_call.1} parent=1 // pred_region
      %102 = dma.done [#allocation6], 1536
    $region45: #{tpu_custom_call.1} parent=1 // pred_fallthru
      _
    // Predicated region
    $region46: #{tpu_custom_call.1} parent=1 // pred_check
      _
    $region47: #{tpu_custom_call.1} parent=1 // pred_check_branch
      %104 = sbr.rel (0) target = $region49
    $region48: #{tpu_custom_call.1} parent=1 // pred_region
      %105 = dma.done [#allocation9], 24576
    $region49: #{tpu_custom_call.1} parent=1 // pred_fallthru
      _
    // Predicated region
    $region50: #{tpu_custom_call.1} parent=1 // pred_check
      _
    $region51: #{tpu_custom_call.1} parent=1 // pred_check_branch
      %107 = sbr.rel (0) target = $region53
    $region52: #{tpu_custom_call.1} parent=1 // pred_region
      %108 = dma.done [#allocation9], 256
    $region53: #{tpu_custom_call.1} parent=1 // pred_fallthru
      _
    // Predicated region
    $region54: #{tpu_custom_call.1} parent=1 // pred_check
      _
    $region55: #{tpu_custom_call.1} parent=1 // pred_check_branch
      %110 = sbr.rel (0) target = $region57
    $region56: #{tpu_custom_call.1} parent=1 // pred_region
      %111 = dma.done [#allocation12], 384
    $region57: #{tpu_custom_call.1} parent=1 // pred_fallthru
      _
    // Predicated region
    $region58: #{tpu_custom_call.1} parent=1 // pred_check
      _
    $region59: #{tpu_custom_call.1} parent=1 // pred_check_branch
      %113 = sbr.rel (0) target = $region61
    $region60: #{tpu_custom_call.1} parent=1 // pred_region
      %114 = dma.done [#allocation4], 16
    $region61: #{tpu_custom_call.1} parent=1 // pred_fallthru
      _
    %115 = sfence
    %v116 = vld [vmem:[#allocation2] sm:$0xff]
    %v117 = vld [vmem:[#allocation5] sm:$0xff]
    %119 = vrot.lane.b32.xlu0 %v117, 16
    %v120 = vpop.permute.xlu0 %119
    %vm122 = vcmask 130048
    %v123 = vsel %vm122, %v116, %v120
    %v124 = vld [vmem:[#allocation7] sm:$0xff]
    %v125 = vld [vmem:[#allocation7 + $0x8] sm:$0xff]
    %v126 = vld [vmem:[#allocation7 + $0x10] sm:$0xff]
    %v127 = vld [vmem:[#allocation7 + $0x18] sm:$0xff]
    %v128 = vld [vmem:[#allocation7 + $0x20] sm:$0xff]
    %v129 = vld [vmem:[#allocation7 + $0x28] sm:$0xff]
    %v130 = vld [vmem:[#allocation7 + $0x30] sm:$0xff]
    %v131 = vld [vmem:[#allocation7 + $0x38] sm:$0xff]
    %v132 = vld [vmem:[#allocation7 + $0x40] sm:$0xff]
    %v133 = vld [vmem:[#allocation7 + $0x48] sm:$0xff]
    %v134 = vld [vmem:[#allocation7 + $0x50] sm:$0xff]
    %v135 = vld [vmem:[#allocation7 + $0x58] sm:$0xff]
    %vm136 = vcmask 195584
    %v138 = vsel %vm136, %v123, 0
    %140 = vmatprep.subr.mxu0 %v125
    %141 = vmatpush1.msra.mxu0 %v124
    %142 = vmatprep.subr.mxu0 %v129
    %143 = vmatpush1.msra.mxu0 %v128
    %144 = vmatprep.subr.mxu0 %v133
    %145 = vmatpush1.msra.mxu0 %v132
    %146 = vmatprep.subr.mxu0 0.0
    %147 = vmatpush1.msra.mxu0 0.0
    %148 = vmatprep.subr.mxu0 0.0
    %149 = vmatpush1.msra.mxu0 0.0
    %150 = vmatprep.subr.mxu0 0.0
    %151 = vmatpush1.msra.mxu0 0.0
    %152 = vmatprep.subr.mxu0 0.0
    %153 = vmatpush1.msra.mxu0 0.0
    %154 = vmatprep.subr.mxu0 0.0
    %155 = vmatpush1.msra.mxu0 0.0
    %156 = vmatprep.subr.mxu0 0.0
    %157 = vmatpush1.msra.mxu0 0.0
    %158 = vmatprep.subr.mxu0 0.0
    %159 = vmatpush1.msra.mxu0 0.0
    %160 = vmatprep.subr.mxu0 0.0
    %161 = vmatpush1.msra.mxu0 0.0
    %162 = vmatprep.subr.mxu0 0.0
    %163 = vmatpush1.msra.mxu0 0.0
    %164 = vmatprep.subr.mxu0 0.0
    %165 = vmatpush1.msra.mxu0 0.0
    %166 = vmatprep.subr.mxu0 0.0
    %167 = vmatpush1.msra.mxu0 0.0
    %168 = vmatprep.subr.mxu0 0.0
    %169 = vmatpush1.msra.mxu0 0.0
    %170 = vmatprep.subr.mxu0 0.0
    %171 = vmatpush1.msra.mxu0 0.0
    %172 = vmatprep.subr.mxu0 0.0
    %173 = vmatpush1.msra.mxu0 0.0
    %174 = vmatprep.subr.mxu0 0.0
    %175 = vmatpush1.msra.mxu0 0.0
    %176 = vmatprep.subr.mxu0 0.0
    %177 = vmatpush1.msra.mxu0 0.0
    %178 = vmatprep.subr.mxu0 0.0
    %179 = vmatpush1.msra.mxu0 0.0
    %180 = vmatprep.subr.mxu0 0.0
    %181 = vmatpush1.msra.mxu0 0.0
    %182 = vmatprep.subr.mxu0 0.0
    %183 = vmatpush1.msra.mxu0 0.0
    %184 = vmatprep.subr.mxu0 0.0
    %185 = vmatpush1.msra.mxu0 0.0
    %186 = vmatprep.subr.mxu0 0.0
    %187 = vmatpush1.msra.mxu0 0.0
    %188 = vmatprep.subr.mxu0 0.0
    %189 = vmatpush1.msra.mxu0 0.0
    %190 = vmatprep.subr.mxu0 0.0
    %191 = vmatpush1.msra.mxu0 0.0
    %192 = vmatprep.subr.mxu0 0.0
    %193 = vmatpush1.msra.mxu0 0.0
    %194 = vmatprep.subr.mxu0 0.0
    %195 = vmatpush1.msra.mxu0 0.0
    %196 = vmatprep.subr.mxu0 0.0
    %197 = vmatpush1.msra.mxu0 0.0
    %198 = vmatprep.subr.mxu0 0.0
    %199 = vmatpush1.msra.mxu0 0.0
    %200 = vmatprep.subr.mxu0 0.0
    %201 = vmatpush1.msra.mxu0 0.0
    %202 = vmatprep.subr.mxu0 0.0
    %203 = vmatpush1.msra.mxu0 0.0
    %204 = vmatprep.mubr.f32.mxu0 0.0
    %205 = vmatmul.mubr.f32.gmra.mrb[0].mxu0 %v138
    %v206 = vpop.f32.mrb[0].mxu0
    %v207 = vadd.f32 0.0, %v206
    %v208 = vpop.f32.mrb[0].mxu0
    %v209 = vadd.f32 0.0, %v208
    %210 = vdwg.mxu0
    %211 = vmatprep.subr.mxu0 %v127
    %212 = vmatpush1.msra.mxu0 %v126
    %213 = vmatprep.subr.mxu0 %v131
    %214 = vmatpush1.msra.mxu0 %v130
    %215 = vmatprep.subr.mxu0 %v135
    %216 = vmatpush1.msra.mxu0 %v134
    %217 = vmatprep.subr.mxu0 0.0
    %218 = vmatpush1.msra.mxu0 0.0
    %219 = vmatprep.subr.mxu0 0.0
    %220 = vmatpush1.msra.mxu0 0.0
    %221 = vmatprep.subr.mxu0 0.0
    %222 = vmatpush1.msra.mxu0 0.0
    %223 = vmatprep.subr.mxu0 0.0
    %224 = vmatpush1.msra.mxu0 0.0
    %225 = vmatprep.subr.mxu0 0.0
    %226 = vmatpush1.msra.mxu0 0.0
    %227 = vmatprep.subr.mxu0 0.0
    %228 = vmatpush1.msra.mxu0 0.0
    %229 = vmatprep.subr.mxu0 0.0
    %230 = vmatpush1.msra.mxu0 0.0
    %231 = vmatprep.subr.mxu0 0.0
    %232 = vmatpush1.msra.mxu0 0.0
    %233 = vmatprep.subr.mxu0 0.0
    %234 = vmatpush1.msra.mxu0 0.0
    %235 = vmatprep.subr.mxu0 0.0
    %236 = vmatpush1.msra.mxu0 0.0
    %237 = vmatprep.subr.mxu0 0.0
    %238 = vmatpush1.msra.mxu0 0.0
    %239 = vmatprep.subr.mxu0 0.0
    %240 = vmatpush1.msra.mxu0 0.0
    %241 = vmatprep.subr.mxu0 0.0
    %242 = vmatpush1.msra.mxu0 0.0
    %243 = vmatprep.subr.mxu0 0.0
    %244 = vmatpush1.msra.mxu0 0.0
    %245 = vmatprep.subr.mxu0 0.0
    %246 = vmatpush1.msra.mxu0 0.0
    %247 = vmatprep.subr.mxu0 0.0
    %248 = vmatpush1.msra.mxu0 0.0
    %249 = vmatprep.subr.mxu0 0.0
    %250 = vmatpush1.msra.mxu0 0.0
    %251 = vmatprep.subr.mxu0 0.0
    %252 = vmatpush1.msra.mxu0 0.0
    %253 = vmatprep.subr.mxu0 0.0
    %254 = vmatpush1.msra.mxu0 0.0
    %255 = vmatprep.subr.mxu0 0.0
    %256 = vmatpush1.msra.mxu0 0.0
    %257 = vmatprep.subr.mxu0 0.0
    %258 = vmatpush1.msra.mxu0 0.0
    %259 = vmatprep.subr.mxu0 0.0
    %260 = vmatpush1.msra.mxu0 0.0
    %261 = vmatprep.subr.mxu0 0.0
    %262 = vmatpush1.msra.mxu0 0.0
    %263 = vmatprep.subr.mxu0 0.0
    %264 = vmatpush1.msra.mxu0 0.0
    %265 = vmatprep.subr.mxu0 0.0
    %266 = vmatpush1.msra.mxu0 0.0
    %267 = vmatprep.subr.mxu0 0.0
    %268 = vmatpush1.msra.mxu0 0.0
    %269 = vmatprep.subr.mxu0 0.0
    %270 = vmatpush1.msra.mxu0 0.0
    %271 = vmatprep.subr.mxu0 0.0
    %272 = vmatpush1.msra.mxu0 0.0
    %273 = vmatprep.subr.mxu0 0.0
    %274 = vmatpush1.msra.mxu0 0.0
    %275 = vmatprep.mubr.f32.mxu0 0.0
    %276 = vmatmul.mubr.f32.gmra.mrb[0].mxu0 %v138
    %v277 = vpop.f32.mrb[0].mxu0
    %v278 = vadd.f32 0.0, %v277
    %v279 = vpop.f32.mrb[0].mxu0
    %v280 = vadd.f32 0.0, %v279
    %281 = vdwg.mxu0
    %v282 = vld [vmem:[#allocation10] ss:$8 sm:$0x3]
    %v284 = vlaneseq
    %v285 = vshrl.u32 %v284, 7
    %v286 = vsub.s32 0, %v285
    %v287 = vrot.slane %v282, %v286
    %v288 = vlaneseq
    %v289 = vshrl.u32 %v288, 7
    %v290 = vsub.s32 1, %v289
    %v291 = vrot.slane %v282, %v290
    %v294 = vadd.f32 %v207, %v287
    %v295 = vadd.f32 %v209, %v291
    %s296 = scalar_lea.vmem [#allocation10], 3
    %v297 = vld [vmem:[%s296] ss:$8 sm:$0x3]
    %v299 = vlaneseq
    %v300 = vshrl.u32 %v299, 7
    %v301 = vsub.s32 0, %v300
    %v302 = vrot.slane %v297, %v301
    %v303 = vlaneseq
    %v304 = vshrl.u32 %v303, 7
    %v305 = vsub.s32 1, %v304
    %v306 = vrot.slane %v297, %v305
    %v309 = vadd.f32 %v278, %v302
    %v310 = vadd.f32 %v280, %v306
    %s311 = scalar_lea.vmem [#allocation10], 1
    %v312 = vld [vmem:[%s311] ss:$8 sm:$0x3]
    %s313 = scalar_lea.vmem [#allocation10], 2
    %v314 = vld [vmem:[%s313] ss:$8 sm:$0x3]
    %v315 = vadd.f32 %v294, %v295
    %316 = vadd.xlane.f32.xlu0 %v315
    %v317 = vpop.xlane.xlu0 %316
    %v318 = vmul.f32 %v294, %v294
    %v319 = vmul.f32 %v295, %v295
    %v320 = vadd.f32 %v318, %v319
    %321 = vadd.xlane.f32.xlu0 %v320
    %v322 = vpop.xlane.xlu0 %321
    %v323 = vmul.f32 %v317, 0.005
    %v324 = vmul.f32 %v322, 0.005
    %v325 = vmul.f32 %v323, %v323
    %v326 = vsub.f32 %v324, %v325
    %v327 = vsub.f32 %v294, %v323
    %v328 = vsub.f32 %v295, %v323
    %v329 = vadd.f32 %v326, 1e-05
    %v330 = vrsqrt.pop %v329
    %v331 = vmul.f32 %v327, %v330
    %v332 = vmul.f32 %v328, %v330
    %v334 = vlaneseq
    %v335 = vshrl.u32 %v334, 7
    %v336 = vsub.s32 0, %v335
    %v337 = vrot.slane %v312, %v336
    %v338 = vlaneseq
    %v339 = vshrl.u32 %v338, 7
    %v340 = vsub.s32 1, %v339
    %v341 = vrot.slane %v312, %v340
    %v344 = vmul.f32 %v331, %v337
    %v345 = vmul.f32 %v332, %v341
    %v347 = vlaneseq
    %v348 = vshrl.u32 %v347, 7
    %v349 = vsub.s32 0, %v348
    %v350 = vrot.slane %v314, %v349
    %v351 = vlaneseq
    %v352 = vshrl.u32 %v351, 7
    %v353 = vsub.s32 1, %v352
    %v354 = vrot.slane %v314, %v353
    %v357 = vadd.f32 %v344, %v350
    %v358 = vadd.f32 %v345, %v354
    %s359 = scalar_lea.vmem [#allocation10], 4
    %v360 = vld [vmem:[%s359] ss:$8 sm:$0x3]
    %s361 = scalar_lea.vmem [#allocation10], 5
    %v362 = vld [vmem:[%s361] ss:$8 sm:$0x3]
    %v363 = vadd.f32 %v309, %v310
    %364 = vadd.xlane.f32.xlu0 %v363
    %v365 = vpop.xlane.xlu0 %364
    %v366 = vmul.f32 %v309, %v309
    %v367 = vmul.f32 %v310, %v310
    %v368 = vadd.f32 %v366, %v367
    %369 = vadd.xlane.f32.xlu0 %v368
    %v370 = vpop.xlane.xlu0 %369
    %v371 = vmul.f32 %v365, 0.005
    %v372 = vmul.f32 %v370, 0.005
    %v373 = vmul.f32 %v371, %v371
    %v374 = vsub.f32 %v372, %v373
    %v375 = vsub.f32 %v309, %v371
    %v376 = vsub.f32 %v310, %v371
    %v377 = vadd.f32 %v374, 1e-05
    %v378 = vrsqrt.pop %v377
    %v379 = vmul.f32 %v375, %v378
    %v380 = vmul.f32 %v376, %v378
    %v382 = vlaneseq
    %v383 = vshrl.u32 %v382, 7
    %v384 = vsub.s32 0, %v383
    %v385 = vrot.slane %v360, %v384
    %v386 = vlaneseq
    %v387 = vshrl.u32 %v386, 7
    %v388 = vsub.s32 1, %v387
    %v389 = vrot.slane %v360, %v388
    %v392 = vmul.f32 %v379, %v385
    %v393 = vmul.f32 %v380, %v389
    %v395 = vlaneseq
    %v396 = vshrl.u32 %v395, 7
    %v397 = vsub.s32 0, %v396
    %v398 = vrot.slane %v362, %v397
    %v399 = vlaneseq
    %v400 = vshrl.u32 %v399, 7
    %v401 = vsub.s32 1, %v400
    %v402 = vrot.slane %v362, %v401
    %v405 = vadd.f32 %v392, %v398
    %v406 = vadd.f32 %v393, %v402
    %vm407 = vcmp.gt.f32.partialorder %v357, 0.0
    %vm408 = vcmp.gt.f32.partialorder %v358, 0.0
    %v409 = vmul.f32 %v357, 0.01
    %v410 = vmul.f32 %v358, 0.01
    %v411 = vsel %vm407, %v357, %v409
    %v412 = vsel %vm408, %v358, %v410
    %vm413 = vcmp.gt.f32.partialorder %v405, 0.0
    %vm414 = vcmp.gt.f32.partialorder %v406, 0.0
    %v415 = vmul.f32 %v405, 0.01
    %v416 = vmul.f32 %v406, 0.01
    %v417 = vsel %vm413, %v405, %v415
    %v418 = vsel %vm414, %v406, %v416
    %v419 = vld [vmem:[#allocation8] sm:$0xff]
    %v420 = vld [vmem:[#allocation8 + $0x8] sm:$0xff]
    %v421 = vld [vmem:[#allocation8 + $0x10] sm:$0xff]
    %v422 = vld [vmem:[#allocation8 + $0x18] sm:$0xff]
    %v423 = vld [vmem:[#allocation8 + $0x20] sm:$0xff]
    %v424 = vld [vmem:[#allocation8 + $0x28] sm:$0xff]
    %v425 = vld [vmem:[#allocation8 + $0x30] sm:$0xff]
    %v426 = vld [vmem:[#allocation8 + $0x38] sm:$0xff]
    %v427 = vld [vmem:[#allocation8 + $0x40] sm:$0xff]
    %v428 = vld [vmem:[#allocation8 + $0x48] sm:$0xff]
    %v429 = vld [vmem:[#allocation8 + $0x50] sm:$0xff]
    %v430 = vld [vmem:[#allocation8 + $0x58] sm:$0xff]
    %v431 = vld [vmem:[#allocation8 + $0x60] sm:$0xff]
    %v432 = vld [vmem:[#allocation8 + $0x68] sm:$0xff]
    %v433 = vld [vmem:[#allocation8 + $0x70] sm:$0xff]
    %v434 = vld [vmem:[#allocation8 + $0x78] sm:$0xff]
    %v435 = vld [vmem:[#allocation8 + $0x80] sm:$0xff]
    %v436 = vld [vmem:[#allocation8 + $0x88] sm:$0xff]
    %v437 = vld [vmem:[#allocation8 + $0x90] sm:$0xff]
    %v438 = vld [vmem:[#allocation8 + $0x98] sm:$0xff]
    %v439 = vld [vmem:[#allocation8 + $0xa0] sm:$0xff]
    %v440 = vld [vmem:[#allocation8 + $0xa8] sm:$0xff]
    %v441 = vld [vmem:[#allocation8 + $0xb0] sm:$0xff]
    %v442 = vld [vmem:[#allocation8 + $0xb8] sm:$0xff]
    %v443 = vld [vmem:[#allocation8 + $0xc0] sm:$0xff]
    %v444 = vld [vmem:[#allocation8 + $0xc8] sm:$0xff]
    %v445 = vld [vmem:[#allocation8 + $0xd0] sm:$0xff]
    %v446 = vld [vmem:[#allocation8 + $0xd8] sm:$0xff]
    %v447 = vld [vmem:[#allocation8 + $0xe0] sm:$0xff]
    %v448 = vld [vmem:[#allocation8 + $0xe8] sm:$0xff]
    %v449 = vld [vmem:[#allocation8 + $0xf0] sm:$0xff]
    %v450 = vld [vmem:[#allocation8 + $0xf8] sm:$0xff]
    %v451 = vld [vmem:[#allocation8 + $0x100] sm:$0xff]
    %v452 = vld [vmem:[#allocation8 + $0x108] sm:$0xff]
    %v453 = vld [vmem:[#allocation8 + $0x110] sm:$0xff]
    %v454 = vld [vmem:[#allocation8 + $0x118] sm:$0xff]
    %v455 = vld [vmem:[#allocation8 + $0x120] sm:$0xff]
    %v456 = vld [vmem:[#allocation8 + $0x128] sm:$0xff]
    %v457 = vld [vmem:[#allocation8 + $0x130] sm:$0xff]
    %v458 = vld [vmem:[#allocation8 + $0x138] sm:$0xff]
    %v459 = vld [vmem:[#allocation8 + $0x140] sm:$0xff]
    %v460 = vld [vmem:[#allocation8 + $0x148] sm:$0xff]
    %v461 = vld [vmem:[#allocation8 + $0x150] sm:$0xff]
    %v462 = vld [vmem:[#allocation8 + $0x158] sm:$0xff]
    %v463 = vld [vmem:[#allocation8 + $0x160] sm:$0xff]
    %v464 = vld [vmem:[#allocation8 + $0x168] sm:$0xff]
    %v465 = vld [vmem:[#allocation8 + $0x170] sm:$0xff]
    %v466 = vld [vmem:[#allocation8 + $0x178] sm:$0xff]
    %v467 = vld [vmem:[#allocation8 + $0x180] sm:$0xff]
    %v468 = vld [vmem:[#allocation8 + $0x188] sm:$0xff]
    %v469 = vld [vmem:[#allocation8 + $0x190] sm:$0xff]
    %v470 = vld [vmem:[#allocation8 + $0x198] sm:$0xff]
    %v471 = vld [vmem:[#allocation8 + $0x1a0] sm:$0xff]
    %v472 = vld [vmem:[#allocation8 + $0x1a8] sm:$0xff]
    %v473 = vld [vmem:[#allocation8 + $0x1b0] sm:$0xff]
    %v474 = vld [vmem:[#allocation8 + $0x1b8] sm:$0xff]
    %v475 = vld [vmem:[#allocation8 + $0x1c0] sm:$0xff]
    %v476 = vld [vmem:[#allocation8 + $0x1c8] sm:$0xff]
    %v477 = vld [vmem:[#allocation8 + $0x1d0] sm:$0xff]
    %v478 = vld [vmem:[#allocation8 + $0x1d8] sm:$0xff]
    %v479 = vld [vmem:[#allocation8 + $0x1e0] sm:$0xff]
    %v480 = vld [vmem:[#allocation8 + $0x1e8] sm:$0xff]
    %v481 = vld [vmem:[#allocation8 + $0x1f0] sm:$0xff]
    %v482 = vld [vmem:[#allocation8 + $0x1f8] sm:$0xff]
    %v483 = vld [vmem:[#allocation8 + $0x200] sm:$0xff]
    %v484 = vld [vmem:[#allocation8 + $0x208] sm:$0xff]
    %v485 = vld [vmem:[#allocation8 + $0x210] sm:$0xff]
    %v486 = vld [vmem:[#allocation8 + $0x218] sm:$0xff]
    %v487 = vld [vmem:[#allocation8 + $0x220] sm:$0xff]
    %v488 = vld [vmem:[#allocation8 + $0x228] sm:$0xff]
    %v489 = vld [vmem:[#allocation8 + $0x230] sm:$0xff]
    %v490 = vld [vmem:[#allocation8 + $0x238] sm:$0xff]
    %v491 = vld [vmem:[#allocation8 + $0x240] sm:$0xff]
    %v492 = vld [vmem:[#allocation8 + $0x248] sm:$0xff]
    %v493 = vld [vmem:[#allocation8 + $0x250] sm:$0xff]
    %v494 = vld [vmem:[#allocation8 + $0x258] sm:$0xff]
    %v495 = vld [vmem:[#allocation8 + $0x260] sm:$0xff]
    %v496 = vld [vmem:[#allocation8 + $0x268] sm:$0xff]
    %v497 = vld [vmem:[#allocation8 + $0x270] sm:$0xff]
    %v498 = vld [vmem:[#allocation8 + $0x278] sm:$0xff]
    %v499 = vld [vmem:[#allocation8 + $0x280] sm:$0xff]
    %v500 = vld [vmem:[#allocation8 + $0x288] sm:$0xff]
    %v501 = vld [vmem:[#allocation8 + $0x290] sm:$0xff]
    %v502 = vld [vmem:[#allocation8 + $0x298] sm:$0xff]
    %v503 = vld [vmem:[#allocation8 + $0x2a0] sm:$0xff]
    %v504 = vld [vmem:[#allocation8 + $0x2a8] sm:$0xff]
    %v505 = vld [vmem:[#allocation8 + $0x2b0] sm:$0xff]
    %v506 = vld [vmem:[#allocation8 + $0x2b8] sm:$0xff]
    %v507 = vld [vmem:[#allocation8 + $0x2c0] sm:$0xff]
    %v508 = vld [vmem:[#allocation8 + $0x2c8] sm:$0xff]
    %v509 = vld [vmem:[#allocation8 + $0x2d0] sm:$0xff]
    %v510 = vld [vmem:[#allocation8 + $0x2d8] sm:$0xff]
    %v511 = vld [vmem:[#allocation8 + $0x2e0] sm:$0xff]
    %v512 = vld [vmem:[#allocation8 + $0x2e8] sm:$0xff]
    %v513 = vld [vmem:[#allocation8 + $0x2f0] sm:$0xff]
    %v514 = vld [vmem:[#allocation8 + $0x2f8] sm:$0xff]
    %v515 = vld [vmem:[#allocation11] ss:$8 sm:$0x7]
    %v517 = vlaneseq
    %v518 = vshrl.u32 %v517, 7
    %v519 = vsub.s32 0, %v518
    %v520 = vrot.slane %v515, %v519
    %v521 = vlaneseq
    %v522 = vshrl.u32 %v521, 7
    %v523 = vsub.s32 1, %v522
    %v524 = vrot.slane %v515, %v523
    %v525 = vlaneseq
    %v526 = vshrl.u32 %v525, 7
    %v527 = vsub.s32 2, %v526
    %v528 = vrot.slane %v515, %v527
    %532 = vmatprep.subr.mxu0 %v420
    %533 = vmatpush1.msra.mxu0 %v419
    %534 = vmatprep.subr.mxu0 %v423
    %535 = vmatpush1.msra.mxu0 %v422
    %536 = vmatprep.subr.mxu0 %v426
    %537 = vmatpush1.msra.mxu0 %v425
    %538 = vmatprep.subr.mxu0 %v429
    %539 = vmatpush1.msra.mxu0 %v428
    %540 = vmatprep.subr.mxu0 %v432
    %541 = vmatpush1.msra.mxu0 %v431
    %542 = vmatprep.subr.mxu0 %v435
    %543 = vmatpush1.msra.mxu0 %v434
    %544 = vmatprep.subr.mxu0 %v438
    %545 = vmatpush1.msra.mxu0 %v437
    %546 = vmatprep.subr.mxu0 %v441
    %547 = vmatpush1.msra.mxu0 %v440
    %548 = vmatprep.subr.mxu0 %v444
    %549 = vmatpush1.msra.mxu0 %v443
    %550 = vmatprep.subr.mxu0 %v447
    %551 = vmatpush1.msra.mxu0 %v446
    %552 = vmatprep.subr.mxu0 %v450
    %553 = vmatpush1.msra.mxu0 %v449
    %554 = vmatprep.subr.mxu0 %v453
    %555 = vmatpush1.msra.mxu0 %v452
    %556 = vmatprep.subr.mxu0 %v456
    %557 = vmatpush1.msra.mxu0 %v455
    %558 = vmatprep.subr.mxu0 %v459
    %559 = vmatpush1.msra.mxu0 %v458
    %560 = vmatprep.subr.mxu0 %v462
    %561 = vmatpush1.msra.mxu0 %v461
    %562 = vmatprep.subr.mxu0 %v465
    %563 = vmatpush1.msra.mxu0 %v464
    %564 = vmatprep.subr.mxu0 %v468
    %565 = vmatpush1.msra.mxu0 %v467
    %566 = vmatprep.subr.mxu0 %v471
    %567 = vmatpush1.msra.mxu0 %v470
    %568 = vmatprep.subr.mxu0 %v474
    %569 = vmatpush1.msra.mxu0 %v473
    %570 = vmatprep.subr.mxu0 %v477
    %571 = vmatpush1.msra.mxu0 %v476
    %572 = vmatprep.subr.mxu0 %v480
    %573 = vmatpush1.msra.mxu0 %v479
    %574 = vmatprep.subr.mxu0 %v483
    %575 = vmatpush1.msra.mxu0 %v482
    %576 = vmatprep.subr.mxu0 %v486
    %577 = vmatpush1.msra.mxu0 %v485
    %578 = vmatprep.subr.mxu0 %v489
    %579 = vmatpush1.msra.mxu0 %v488
    %580 = vmatprep.subr.mxu0 %v492
    %581 = vmatpush1.msra.mxu0 %v491
    %582 = vmatprep.subr.mxu0 %v495
    %583 = vmatpush1.msra.mxu0 %v494
    %584 = vmatprep.subr.mxu0 %v498
    %585 = vmatpush1.msra.mxu0 %v497
    %586 = vmatprep.subr.mxu0 %v501
    %587 = vmatpush1.msra.mxu0 %v500
    %588 = vmatprep.subr.mxu0 %v504
    %589 = vmatpush1.msra.mxu0 %v503
    %590 = vmatprep.subr.mxu0 %v507
    %591 = vmatpush1.msra.mxu0 %v506
    %592 = vmatprep.subr.mxu0 %v510
    %593 = vmatpush1.msra.mxu0 %v509
    %594 = vmatprep.subr.mxu0 %v513
    %595 = vmatpush1.msra.mxu0 %v512
    %596 = vmatprep.mubr.f32.mxu0 %v412
    %597 = vmatmul.mubr.f32.gmra.mrb[0].mxu0 %v411
    %v598 = vpop.f32.mrb[0].mxu0
    %v599 = vadd.f32 %v520, %v598
    %v600 = vpop.f32.mrb[0].mxu0
    %v601 = vadd.f32 %v524, %v600
    %602 = vdwg.mxu0
    %603 = vmatprep.subr.mxu0 0.0
    %604 = vmatpush1.msra.mxu0 %v421
    %605 = vmatprep.subr.mxu0 0.0
    %606 = vmatpush1.msra.mxu0 %v424
    %607 = vmatprep.subr.mxu0 0.0
    %608 = vmatpush1.msra.mxu0 %v427
    %609 = vmatprep.subr.mxu0 0.0
    %610 = vmatpush1.msra.mxu0 %v430
    %611 = vmatprep.subr.mxu0 0.0
    %612 = vmatpush1.msra.mxu0 %v433
    %613 = vmatprep.subr.mxu0 0.0
    %614 = vmatpush1.msra.mxu0 %v436
    %615 = vmatprep.subr.mxu0 0.0
    %616 = vmatpush1.msra.mxu0 %v439
    %617 = vmatprep.subr.mxu0 0.0
    %618 = vmatpush1.msra.mxu0 %v442
    %619 = vmatprep.subr.mxu0 0.0
    %620 = vmatpush1.msra.mxu0 %v445
    %621 = vmatprep.subr.mxu0 0.0
    %622 = vmatpush1.msra.mxu0 %v448
    %623 = vmatprep.subr.mxu0 0.0
    %624 = vmatpush1.msra.mxu0 %v451
    %625 = vmatprep.subr.mxu0 0.0
    %626 = vmatpush1.msra.mxu0 %v454
    %627 = vmatprep.subr.mxu0 0.0
    %628 = vmatpush1.msra.mxu0 %v457
    %629 = vmatprep.subr.mxu0 0.0
    %630 = vmatpush1.msra.mxu0 %v460
    %631 = vmatprep.subr.mxu0 0.0
    %632 = vmatpush1.msra.mxu0 %v463
    %633 = vmatprep.subr.mxu0 0.0
    %634 = vmatpush1.msra.mxu0 %v466
    %635 = vmatprep.subr.mxu0 0.0
    %636 = vmatpush1.msra.mxu0 %v469
    %637 = vmatprep.subr.mxu0 0.0
    %638 = vmatpush1.msra.mxu0 %v472
    %639 = vmatprep.subr.mxu0 0.0
    %640 = vmatpush1.msra.mxu0 %v475
    %641 = vmatprep.subr.mxu0 0.0
    %642 = vmatpush1.msra.mxu0 %v478
    %643 = vmatprep.subr.mxu0 0.0
    %644 = vmatpush1.msra.mxu0 %v481
    %645 = vmatprep.subr.mxu0 0.0
    %646 = vmatpush1.msra.mxu0 %v484
    %647 = vmatprep.subr.mxu0 0.0
    %648 = vmatpush1.msra.mxu0 %v487
    %649 = vmatprep.subr.mxu0 0.0
    %650 = vmatpush1.msra.mxu0 %v490
    %651 = vmatprep.subr.mxu0 0.0
    %652 = vmatpush1.msra.mxu0 %v493
    %653 = vmatprep.subr.mxu0 0.0
    %654 = vmatpush1.msra.mxu0 %v496
    %655 = vmatprep.subr.mxu0 0.0
    %656 = vmatpush1.msra.mxu0 %v499
    %657 = vmatprep.subr.mxu0 0.0
    %658 = vmatpush1.msra.mxu0 %v502
    %659 = vmatprep.subr.mxu0 0.0
    %660 = vmatpush1.msra.mxu0 %v505
    %661 = vmatprep.subr.mxu0 0.0
    %662 = vmatpush1.msra.mxu0 %v508
    %663 = vmatprep.subr.mxu0 0.0
    %664 = vmatpush1.msra.mxu0 %v511
    %665 = vmatprep.subr.mxu0 0.0
    %666 = vmatpush1.msra.mxu0 %v514
    %667 = vmatprep.mubr.f32.mxu0 %v412
    %668 = vmatmul.mubr.f32.gmra.mrb[0].mxu0 %v411
    %v669 = vpop.f32.mrb[0].mxu0
    %v670 = vadd.f32 %v528, %v669
    %v671 = vpop.f32.mrb[0].mxu0
    %672 = vdwg.mxu0
    %s673 = scalar_lea.vmem [#allocation8], 768
    %v674 = vld [vmem:[%s673] sm:$0xff]
    %v675 = vld [vmem:[%s673 + $0x8] sm:$0xff]
    %v676 = vld [vmem:[%s673 + $0x10] sm:$0xff]
    %v677 = vld [vmem:[%s673 + $0x18] sm:$0xff]
    %v678 = vld [vmem:[%s673 + $0x20] sm:$0xff]
    %v679 = vld [vmem:[%s673 + $0x28] sm:$0xff]
    %v680 = vld [vmem:[%s673 + $0x30] sm:$0xff]
    %v681 = vld [vmem:[%s673 + $0x38] sm:$0xff]
    %v682 = vld [vmem:[%s673 + $0x40] sm:$0xff]
    %v683 = vld [vmem:[%s673 + $0x48] sm:$0xff]
    %v684 = vld [vmem:[%s673 + $0x50] sm:$0xff]
    %v685 = vld [vmem:[%s673 + $0x58] sm:$0xff]
    %v686 = vld [vmem:[%s673 + $0x60] sm:$0xff]
    %v687 = vld [vmem:[%s673 + $0x68] sm:$0xff]
    %v688 = vld [vmem:[%s673 + $0x70] sm:$0xff]
    %v689 = vld [vmem:[%s673 + $0x78] sm:$0xff]
    %v690 = vld [vmem:[%s673 + $0x80] sm:$0xff]
    %v691 = vld [vmem:[%s673 + $0x88] sm:$0xff]
    %v692 = vld [vmem:[%s673 + $0x90] sm:$0xff]
    %v693 = vld [vmem:[%s673 + $0x98] sm:$0xff]
    %v694 = vld [vmem:[%s673 + $0xa0] sm:$0xff]
    %v695 = vld [vmem:[%s673 + $0xa8] sm:$0xff]
    %v696 = vld [vmem:[%s673 + $0xb0] sm:$0xff]
    %v697 = vld [vmem:[%s673 + $0xb8] sm:$0xff]
    %v698 = vld [vmem:[%s673 + $0xc0] sm:$0xff]
    %v699 = vld [vmem:[%s673 + $0xc8] sm:$0xff]
    %v700 = vld [vmem:[%s673 + $0xd0] sm:$0xff]
    %v701 = vld [vmem:[%s673 + $0xd8] sm:$0xff]
    %v702 = vld [vmem:[%s673 + $0xe0] sm:$0xff]
    %v703 = vld [vmem:[%s673 + $0xe8] sm:$0xff]
    %v704 = vld [vmem:[%s673 + $0xf0] sm:$0xff]
    %v705 = vld [vmem:[%s673 + $0xf8] sm:$0xff]
    %v706 = vld [vmem:[%s673 + $0x100] sm:$0xff]
    %v707 = vld [vmem:[%s673 + $0x108] sm:$0xff]
    %v708 = vld [vmem:[%s673 + $0x110] sm:$0xff]
    %v709 = vld [vmem:[%s673 + $0x118] sm:$0xff]
    %v710 = vld [vmem:[%s673 + $0x120] sm:$0xff]
    %v711 = vld [vmem:[%s673 + $0x128] sm:$0xff]
    %v712 = vld [vmem:[%s673 + $0x130] sm:$0xff]
    %v713 = vld [vmem:[%s673 + $0x138] sm:$0xff]
    %v714 = vld [vmem:[%s673 + $0x140] sm:$0xff]
    %v715 = vld [vmem:[%s673 + $0x148] sm:$0xff]
    %v716 = vld [vmem:[%s673 + $0x150] sm:$0xff]
    %v717 = vld [vmem:[%s673 + $0x158] sm:$0xff]
    %v718 = vld [vmem:[%s673 + $0x160] sm:$0xff]
    %v719 = vld [vmem:[%s673 + $0x168] sm:$0xff]
    %v720 = vld [vmem:[%s673 + $0x170] sm:$0xff]
    %v721 = vld [vmem:[%s673 + $0x178] sm:$0xff]
    %v722 = vld [vmem:[%s673 + $0x180] sm:$0xff]
    %v723 = vld [vmem:[%s673 + $0x188] sm:$0xff]
    %v724 = vld [vmem:[%s673 + $0x190] sm:$0xff]
    %v725 = vld [vmem:[%s673 + $0x198] sm:$0xff]
    %v726 = vld [vmem:[%s673 + $0x1a0] sm:$0xff]
    %v727 = vld [vmem:[%s673 + $0x1a8] sm:$0xff]
    %v728 = vld [vmem:[%s673 + $0x1b0] sm:$0xff]
    %v729 = vld [vmem:[%s673 + $0x1b8] sm:$0xff]
    %v730 = vld [vmem:[%s673 + $0x1c0] sm:$0xff]
    %v731 = vld [vmem:[%s673 + $0x1c8] sm:$0xff]
    %v732 = vld [vmem:[%s673 + $0x1d0] sm:$0xff]
    %v733 = vld [vmem:[%s673 + $0x1d8] sm:$0xff]
    %v734 = vld [vmem:[%s673 + $0x1e0] sm:$0xff]
    %v735 = vld [vmem:[%s673 + $0x1e8] sm:$0xff]
    %v736 = vld [vmem:[%s673 + $0x1f0] sm:$0xff]
    %v737 = vld [vmem:[%s673 + $0x1f8] sm:$0xff]
    %v738 = vld [vmem:[%s673 + $0x200] sm:$0xff]
    %v739 = vld [vmem:[%s673 + $0x208] sm:$0xff]
    %v740 = vld [vmem:[%s673 + $0x210] sm:$0xff]
    %v741 = vld [vmem:[%s673 + $0x218] sm:$0xff]
    %v742 = vld [vmem:[%s673 + $0x220] sm:$0xff]
    %v743 = vld [vmem:[%s673 + $0x228] sm:$0xff]
    %v744 = vld [vmem:[%s673 + $0x230] sm:$0xff]
    %v745 = vld [vmem:[%s673 + $0x238] sm:$0xff]
    %v746 = vld [vmem:[%s673 + $0x240] sm:$0xff]
    %v747 = vld [vmem:[%s673 + $0x248] sm:$0xff]
    %v748 = vld [vmem:[%s673 + $0x250] sm:$0xff]
    %v749 = vld [vmem:[%s673 + $0x258] sm:$0xff]
    %v750 = vld [vmem:[%s673 + $0x260] sm:$0xff]
    %v751 = vld [vmem:[%s673 + $0x268] sm:$0xff]
    %v752 = vld [vmem:[%s673 + $0x270] sm:$0xff]
    %v753 = vld [vmem:[%s673 + $0x278] sm:$0xff]
    %v754 = vld [vmem:[%s673 + $0x280] sm:$0xff]
    %v755 = vld [vmem:[%s673 + $0x288] sm:$0xff]
    %v756 = vld [vmem:[%s673 + $0x290] sm:$0xff]
    %v757 = vld [vmem:[%s673 + $0x298] sm:$0xff]
    %v758 = vld [vmem:[%s673 + $0x2a0] sm:$0xff]
    %v759 = vld [vmem:[%s673 + $0x2a8] sm:$0xff]
    %v760 = vld [vmem:[%s673 + $0x2b0] sm:$0xff]
    %v761 = vld [vmem:[%s673 + $0x2b8] sm:$0xff]
    %v762 = vld [vmem:[%s673 + $0x2c0] sm:$0xff]
    %v763 = vld [vmem:[%s673 + $0x2c8] sm:$0xff]
    %v764 = vld [vmem:[%s673 + $0x2d0] sm:$0xff]
    %v765 = vld [vmem:[%s673 + $0x2d8] sm:$0xff]
    %v766 = vld [vmem:[%s673 + $0x2e0] sm:$0xff]
    %v767 = vld [vmem:[%s673 + $0x2e8] sm:$0xff]
    %v768 = vld [vmem:[%s673 + $0x2f0] sm:$0xff]
    %v769 = vld [vmem:[%s673 + $0x2f8] sm:$0xff]
    %s770 = scalar_lea.vmem [#allocation11], 3
    %v771 = vld [vmem:[%s770] ss:$8 sm:$0x7]
    %v773 = vlaneseq
    %v774 = vshrl.u32 %v773, 7
    %v775 = vsub.s32 0, %v774
    %v776 = vrot.slane %v771, %v775
    %v777 = vlaneseq
    %v778 = vshrl.u32 %v777, 7
    %v779 = vsub.s32 1, %v778
    %v780 = vrot.slane %v771, %v779
    %v781 = vlaneseq
    %v782 = vshrl.u32 %v781, 7
    %v783 = vsub.s32 2, %v782
    %v784 = vrot.slane %v771, %v783
    %788 = vmatprep.subr.mxu0 %v675
    %789 = vmatpush1.msra.mxu0 %v674
    %790 = vmatprep.subr.mxu0 %v678
    %791 = vmatpush1.msra.mxu0 %v677
    %792 = vmatprep.subr.mxu0 %v681
    %793 = vmatpush1.msra.mxu0 %v680
    %794 = vmatprep.subr.mxu0 %v684
    %795 = vmatpush1.msra.mxu0 %v683
    %796 = vmatprep.subr.mxu0 %v687
    %797 = vmatpush1.msra.mxu0 %v686
    %798 = vmatprep.subr.mxu0 %v690
    %799 = vmatpush1.msra.mxu0 %v689
    %800 = vmatprep.subr.mxu0 %v693
    %801 = vmatpush1.msra.mxu0 %v692
    %802 = vmatprep.subr.mxu0 %v696
    %803 = vmatpush1.msra.mxu0 %v695
    %804 = vmatprep.subr.mxu0 %v699
    %805 = vmatpush1.msra.mxu0 %v698
    %806 = vmatprep.subr.mxu0 %v702
    %807 = vmatpush1.msra.mxu0 %v701
    %808 = vmatprep.subr.mxu0 %v705
    %809 = vmatpush1.msra.mxu0 %v704
    %810 = vmatprep.subr.mxu0 %v708
    %811 = vmatpush1.msra.mxu0 %v707
    %812 = vmatprep.subr.mxu0 %v711
    %813 = vmatpush1.msra.mxu0 %v710
    %814 = vmatprep.subr.mxu0 %v714
    %815 = vmatpush1.msra.mxu0 %v713
    %816 = vmatprep.subr.mxu0 %v717
    %817 = vmatpush1.msra.mxu0 %v716
    %818 = vmatprep.subr.mxu0 %v720
    %819 = vmatpush1.msra.mxu0 %v719
    %820 = vmatprep.subr.mxu0 %v723
    %821 = vmatpush1.msra.mxu0 %v722
    %822 = vmatprep.subr.mxu0 %v726
    %823 = vmatpush1.msra.mxu0 %v725
    %824 = vmatprep.subr.mxu0 %v729
    %825 = vmatpush1.msra.mxu0 %v728
    %826 = vmatprep.subr.mxu0 %v732
    %827 = vmatpush1.msra.mxu0 %v731
    %828 = vmatprep.subr.mxu0 %v735
    %829 = vmatpush1.msra.mxu0 %v734
    %830 = vmatprep.subr.mxu0 %v738
    %831 = vmatpush1.msra.mxu0 %v737
    %832 = vmatprep.subr.mxu0 %v741
    %833 = vmatpush1.msra.mxu0 %v740
    %834 = vmatprep.subr.mxu0 %v744
    %835 = vmatpush1.msra.mxu0 %v743
    %836 = vmatprep.subr.mxu0 %v747
    %837 = vmatpush1.msra.mxu0 %v746
    %838 = vmatprep.subr.mxu0 %v750
    %839 = vmatpush1.msra.mxu0 %v749
    %840 = vmatprep.subr.mxu0 %v753
    %841 = vmatpush1.msra.mxu0 %v752
    %842 = vmatprep.subr.mxu0 %v756
    %843 = vmatpush1.msra.mxu0 %v755
    %844 = vmatprep.subr.mxu0 %v759
    %845 = vmatpush1.msra.mxu0 %v758
    %846 = vmatprep.subr.mxu0 %v762
    %847 = vmatpush1.msra.mxu0 %v761
    %848 = vmatprep.subr.mxu0 %v765
    %849 = vmatpush1.msra.mxu0 %v764
    %850 = vmatprep.subr.mxu0 %v768
    %851 = vmatpush1.msra.mxu0 %v767
    %852 = vmatprep.mubr.f32.mxu0 %v418
    %853 = vmatmul.mubr.f32.gmra.mrb[0].mxu0 %v417
    %v854 = vpop.f32.mrb[0].mxu0
    %v855 = vadd.f32 %v776, %v854
    %v856 = vpop.f32.mrb[0].mxu0
    %v857 = vadd.f32 %v780, %v856
    %858 = vdwg.mxu0
    %859 = vmatprep.subr.mxu0 0.0
    %860 = vmatpush1.msra.mxu0 %v676
    %861 = vmatprep.subr.mxu0 0.0
    %862 = vmatpush1.msra.mxu0 %v679
    %863 = vmatprep.subr.mxu0 0.0
    %864 = vmatpush1.msra.mxu0 %v682
    %865 = vmatprep.subr.mxu0 0.0
    %866 = vmatpush1.msra.mxu0 %v685
    %867 = vmatprep.subr.mxu0 0.0
    %868 = vmatpush1.msra.mxu0 %v688
    %869 = vmatprep.subr.mxu0 0.0
    %870 = vmatpush1.msra.mxu0 %v691
    %871 = vmatprep.subr.mxu0 0.0
    %872 = vmatpush1.msra.mxu0 %v694
    %873 = vmatprep.subr.mxu0 0.0
    %874 = vmatpush1.msra.mxu0 %v697
    %875 = vmatprep.subr.mxu0 0.0
    %876 = vmatpush1.msra.mxu0 %v700
    %877 = vmatprep.subr.mxu0 0.0
    %878 = vmatpush1.msra.mxu0 %v703
    %879 = vmatprep.subr.mxu0 0.0
    %880 = vmatpush1.msra.mxu0 %v706
    %881 = vmatprep.subr.mxu0 0.0
    %882 = vmatpush1.msra.mxu0 %v709
    %883 = vmatprep.subr.mxu0 0.0
    %884 = vmatpush1.msra.mxu0 %v712
    %885 = vmatprep.subr.mxu0 0.0
    %886 = vmatpush1.msra.mxu0 %v715
    %887 = vmatprep.subr.mxu0 0.0
    %888 = vmatpush1.msra.mxu0 %v718
    %889 = vmatprep.subr.mxu0 0.0
    %890 = vmatpush1.msra.mxu0 %v721
    %891 = vmatprep.subr.mxu0 0.0
    %892 = vmatpush1.msra.mxu0 %v724
    %893 = vmatprep.subr.mxu0 0.0
    %894 = vmatpush1.msra.mxu0 %v727
    %895 = vmatprep.subr.mxu0 0.0
    %896 = vmatpush1.msra.mxu0 %v730
    %897 = vmatprep.subr.mxu0 0.0
    %898 = vmatpush1.msra.mxu0 %v733
    %899 = vmatprep.subr.mxu0 0.0
    %900 = vmatpush1.msra.mxu0 %v736
    %901 = vmatprep.subr.mxu0 0.0
    %902 = vmatpush1.msra.mxu0 %v739
    %903 = vmatprep.subr.mxu0 0.0
    %904 = vmatpush1.msra.mxu0 %v742
    %905 = vmatprep.subr.mxu0 0.0
    %906 = vmatpush1.msra.mxu0 %v745
    %907 = vmatprep.subr.mxu0 0.0
    %908 = vmatpush1.msra.mxu0 %v748
    %909 = vmatprep.subr.mxu0 0.0
    %910 = vmatpush1.msra.mxu0 %v751
    %911 = vmatprep.subr.mxu0 0.0
    %912 = vmatpush1.msra.mxu0 %v754
    %913 = vmatprep.subr.mxu0 0.0
    %914 = vmatpush1.msra.mxu0 %v757
    %915 = vmatprep.subr.mxu0 0.0
    %916 = vmatpush1.msra.mxu0 %v760
    %917 = vmatprep.subr.mxu0 0.0
    %918 = vmatpush1.msra.mxu0 %v763
    %919 = vmatprep.subr.mxu0 0.0
    %920 = vmatpush1.msra.mxu0 %v766
    %921 = vmatprep.subr.mxu0 0.0
    %922 = vmatpush1.msra.mxu0 %v769
    %923 = vmatprep.mubr.f32.mxu0 %v418
    %924 = vmatmul.mubr.f32.gmra.mrb[0].mxu0 %v417
    %v925 = vpop.f32.mrb[0].mxu0
    %v926 = vadd.f32 %v784, %v925
    %v927 = vpop.f32.mrb[0].mxu0
    %928 = vdwg.mxu0
    %s929 = scalar_lea.vmem [#allocation11], 1
    %v930 = vld [vmem:[%s929] ss:$8 sm:$0x7]
    %s931 = scalar_lea.vmem [#allocation11], 2
    %v932 = vld [vmem:[%s931] ss:$8 sm:$0x7]
    %v933 = vadd.f32 %v599, %v601
    %v934 = vadd.f32 %v933, %v670
    %935 = vadd.xlane.f32.xlu0 %v934
    %v936 = vpop.xlane.xlu0 %935
    %v937 = vmul.f32 %v599, %v599
    %v938 = vmul.f32 %v601, %v601
    %v939 = vmul.f32 %v670, %v670
    %v940 = vadd.f32 %v937, %v938
    %v941 = vadd.f32 %v940, %v939
    %942 = vadd.xlane.f32.xlu0 %v941
    %v943 = vpop.xlane.xlu0 %942
    %v944 = vmul.f32 %v936, 0.0033333334
    %v945 = vmul.f32 %v943, 0.0033333334
    %v946 = vmul.f32 %v944, %v944
    %v947 = vsub.f32 %v945, %v946
    %v948 = vsub.f32 %v599, %v944
    %v949 = vsub.f32 %v601, %v944
    %v950 = vsub.f32 %v670, %v944
    %v951 = vadd.f32 %v947, 1e-05
    %v952 = vrsqrt.pop %v951
    %v953 = vmul.f32 %v948, %v952
    %v954 = vmul.f32 %v949, %v952
    %v955 = vmul.f32 %v950, %v952
    %v957 = vlaneseq
    %v958 = vshrl.u32 %v957, 7
    %v959 = vsub.s32 0, %v958
    %v960 = vrot.slane %v930, %v959
    %v961 = vlaneseq
    %v962 = vshrl.u32 %v961, 7
    %v963 = vsub.s32 1, %v962
    %v964 = vrot.slane %v930, %v963
    %v965 = vlaneseq
    %v966 = vshrl.u32 %v965, 7
    %v967 = vsub.s32 2, %v966
    %v968 = vrot.slane %v930, %v967
    %v972 = vmul.f32 %v953, %v960
    %v973 = vmul.f32 %v954, %v964
    %v974 = vmul.f32 %v955, %v968
    %v976 = vlaneseq
    %v977 = vshrl.u32 %v976, 7
    %v978 = vsub.s32 0, %v977
    %v979 = vrot.slane %v932, %v978
    %v980 = vlaneseq
    %v981 = vshrl.u32 %v980, 7
    %v982 = vsub.s32 1, %v981
    %v983 = vrot.slane %v932, %v982
    %v984 = vlaneseq
    %v985 = vshrl.u32 %v984, 7
    %v986 = vsub.s32 2, %v985
    %v987 = vrot.slane %v932, %v986
    %v991 = vadd.f32 %v972, %v979
    %v992 = vadd.f32 %v973, %v983
    %v993 = vadd.f32 %v974, %v987
    %s994 = scalar_lea.vmem [#allocation11], 4
    %v995 = vld [vmem:[%s994] ss:$8 sm:$0x7]
    %s996 = scalar_lea.vmem [#allocation11], 5
    %v997 = vld [vmem:[%s996] ss:$8 sm:$0x7]
    %v998 = vadd.f32 %v855, %v857
    %v999 = vadd.f32 %v998, %v926
    %1000 = vadd.xlane.f32.xlu0 %v999
    %v1001 = vpop.xlane.xlu0 %1000
    %v1002 = vmul.f32 %v855, %v855
    %v1003 = vmul.f32 %v857, %v857
    %v1004 = vmul.f32 %v926, %v926
    %v1005 = vadd.f32 %v1002, %v1003
    %v1006 = vadd.f32 %v1005, %v1004
    %1007 = vadd.xlane.f32.xlu0 %v1006
    %v1008 = vpop.xlane.xlu0 %1007
    %v1009 = vmul.f32 %v1001, 0.0033333334
    %v1010 = vmul.f32 %v1008, 0.0033333334
    %v1011 = vmul.f32 %v1009, %v1009
    %v1012 = vsub.f32 %v1010, %v1011
    %v1013 = vsub.f32 %v855, %v1009
    %v1014 = vsub.f32 %v857, %v1009
    %v1015 = vsub.f32 %v926, %v1009
    %v1016 = vadd.f32 %v1012, 1e-05
    %v1017 = vrsqrt.pop %v1016
    %v1018 = vmul.f32 %v1013, %v1017
    %v1019 = vmul.f32 %v1014, %v1017
    %v1020 = vmul.f32 %v1015, %v1017
    %v1022 = vlaneseq
    %v1023 = vshrl.u32 %v1022, 7
    %v1024 = vsub.s32 0, %v1023
    %v1025 = vrot.slane %v995, %v1024
    %v1026 = vlaneseq
    %v1027 = vshrl.u32 %v1026, 7
    %v1028 = vsub.s32 1, %v1027
    %v1029 = vrot.slane %v995, %v1028
    %v1030 = vlaneseq
    %v1031 = vshrl.u32 %v1030, 7
    %v1032 = vsub.s32 2, %v1031
    %v1033 = vrot.slane %v995, %v1032
    %v1037 = vmul.f32 %v1018, %v1025
    %v1038 = vmul.f32 %v1019, %v1029
    %v1039 = vmul.f32 %v1020, %v1033
    %v1041 = vlaneseq
    %v1042 = vshrl.u32 %v1041, 7
    %v1043 = vsub.s32 0, %v1042
    %v1044 = vrot.slane %v997, %v1043
    %v1045 = vlaneseq
    %v1046 = vshrl.u32 %v1045, 7
    %v1047 = vsub.s32 1, %v1046
    %v1048 = vrot.slane %v997, %v1047
    %v1049 = vlaneseq
    %v1050 = vshrl.u32 %v1049, 7
    %v1051 = vsub.s32 2, %v1050
    %v1052 = vrot.slane %v997, %v1051
    %v1056 = vadd.f32 %v1037, %v1044
    %v1057 = vadd.f32 %v1038, %v1048
    %v1058 = vadd.f32 %v1039, %v1052
    %vm1059 = vcmp.gt.f32.partialorder %v991, 0.0
    %vm1060 = vcmp.gt.f32.partialorder %v992, 0.0
    %vm1061 = vcmp.gt.f32.partialorder %v993, 0.0
    %v1062 = vmul.f32 %v991, 0.01
    %v1063 = vmul.f32 %v992, 0.01
    %v1064 = vmul.f32 %v993, 0.01
    %v1065 = vsel %vm1059, %v991, %v1062
    %v1066 = vsel %vm1060, %v992, %v1063
    %v1067 = vsel %vm1061, %v993, %v1064
    %vm1068 = vcmp.gt.f32.partialorder %v1056, 0.0
    %vm1069 = vcmp.gt.f32.partialorder %v1057, 0.0
    %vm1070 = vcmp.gt.f32.partialorder %v1058, 0.0
    %v1071 = vmul.f32 %v1056, 0.01
    %v1072 = vmul.f32 %v1057, 0.01
    %v1073 = vmul.f32 %v1058, 0.01
    %v1074 = vsel %vm1068, %v1056, %v1071
    %v1075 = vsel %vm1069, %v1057, %v1072
    %v1076 = vsel %vm1070, %v1058, %v1073
    %v1077 = vld [vmem:[%s6] ss:$2 sm:$0x7]
    %v1079 = vlaneseq
    %v1080 = vshrl.u32 %v1079, 7
    %v1081 = vsub.s32 0, %v1080
    %v1082 = vrot.slane %v1077, %v1081
    %v1083 = vlaneseq
    %v1084 = vshrl.u32 %v1083, 7
    %v1085 = vsub.s32 1, %v1084
    %v1086 = vrot.slane %v1077, %v1085
    %v1087 = vlaneseq
    %v1088 = vshrl.u32 %v1087, 7
    %v1089 = vsub.s32 2, %v1088
    %v1090 = vrot.slane %v1077, %v1089
    %v1094 = vmul.f32 %v1065, %v1082
    %v1095 = vmul.f32 %v1066, %v1086
    %v1096 = vmul.f32 %v1067, %v1090
    %v1097 = vadd.f32 %v1094, %v1095
    %v1098 = vadd.f32 %v1097, %v1096
    %1099 = vadd.xlane.f32.xlu0 %v1098
    %v1100 = vpop.xlane.xlu0 %1099
    %s1101 = sld [smem:[#allocation13]]
    %v1102 = vstv %s1101
    %v1103 = vadd.f32 %v1100, %v1102
    %s1104 = scalar_lea.vmem %s6, 1
    %v1105 = vld [vmem:[%s1104] ss:$2 sm:$0x7]
    %v1107 = vlaneseq
    %v1108 = vshrl.u32 %v1107, 7
    %v1109 = vsub.s32 0, %v1108
    %v1110 = vrot.slane %v1105, %v1109
    %v1111 = vlaneseq
    %v1112 = vshrl.u32 %v1111, 7
    %v1113 = vsub.s32 1, %v1112
    %v1114 = vrot.slane %v1105, %v1113
    %v1115 = vlaneseq
    %v1116 = vshrl.u32 %v1115, 7
    %v1117 = vsub.s32 2, %v1116
    %v1118 = vrot.slane %v1105, %v1117
    %v1122 = vmul.f32 %v1074, %v1110
    %v1123 = vmul.f32 %v1075, %v1114
    %v1124 = vmul.f32 %v1076, %v1118
    %v1125 = vadd.f32 %v1122, %v1123
    %v1126 = vadd.f32 %v1125, %v1124
    %1127 = vadd.xlane.f32.xlu0 %v1126
    %v1128 = vpop.xlane.xlu0 %1127
    %s1129 = sld [smem:[#allocation13 + $0x1]]
    %v1130 = vstv %s1129
    %v1131 = vadd.f32 %v1128, %v1130
    %vm1132 = vcmask 7168
    %v1133 = vsel %vm1132, %v1103, %v1131
    %vm1134 = vcmask 15360
    %1135 = vst.msk [vmem:[%s8] sm:$0xff] %vm1134, %v1133
    // Predicated region
    $region62: #{tpu_custom_call.1} parent=1 // pred_check
      _
    $region63: #{tpu_custom_call.1} parent=1 // pred_check_branch
      %1137 = sbr.rel (0) target = $region65
    $region64: #{tpu_custom_call.1} parent=1 // pred_region
      _
    $region65: #{tpu_custom_call.1} parent=1 // pred_fallthru
      _
    // Predicated region
    $region66: #{tpu_custom_call.1} parent=1 // pred_check
      _
    $region67: #{tpu_custom_call.1} parent=1 // pred_check_branch
      %1139 = sbr.rel (0) target = $region69
    $region68: #{tpu_custom_call.1} parent=1 // pred_region
      _
    $region69: #{tpu_custom_call.1} parent=1 // pred_fallthru
      _
    %1140 = vsyncpa [#allocation3], 1
    %1141 = vsyncpa [#allocation6], 1
    %1142 = vsyncpa [#allocation9], 1
    %1143 = vsyncpa [#allocation12], 1
    %1144 = vsyncpa [#allocation4], 1

</llo_original>
